<compile_context>
chip_gen: v7x
topology: tpu7x:2x2x1
jax: 0.10.0
libtpu: 0.0.40
codegen_flags: <defaults>
</compile_context>

<pallas_src>
import jax
import jax.numpy as jnp
from jax.experimental import pallas as pl
from jax.experimental.pallas import tpu as pltpu


def _round_up(x, m):
    return (x + m - 1) // m * m


def _cdiv(a, b):
    return (a + b - 1) // b


def _elu(x):
    # torch.nn.ELU(alpha=1.0); clamp the exp argument so the untaken branch of
    # the select can never overflow.
    return jnp.where(x > 0, x, jnp.exp(jnp.minimum(x, 0.0)) - 1.0)


def _tpu_vmem_budget_bytes():
    """Generation-aware usable-VMEM budget (~3/4 of physical per TensorCore)."""
    cap = 64 * 1024 * 1024  # conservative fallback (v7x per-TC VMEM)
    try:
        info = pltpu.get_tpu_info()
        c = int(getattr(info, "vmem_capacity_bytes", 0) or 0)
        if c > 0:
            cap = c
    except Exception:
        pass
    return (cap * 3) // 4


def _tpu_num_cores():
    try:
        info = pltpu.get_tpu_info()
        for name in ("num_cores", "tensorcore_count", "num_tensorcores",
                     "cores_per_chip"):
            n = getattr(info, name, None)
            if isinstance(n, int) and n > 0:
                return n
    except Exception:
        pass
    return 1


# ------------------------------ fused forward kernel ----------------------------- #
def _fused_kernel(xs_ref, xp_ref, ws_ref, wp_ref, benc_ref, lbl_ref,
                  w1_ref, b1_ref, w2_ref, b2_ref, w3_ref, b3_ref,
                  o_ref, acc_ref):
    k = pl.program_id(1)
    Lp = ws_ref.shape[1]

    @pl.when(k == 0)
    def _init():
        acc_ref[...] = jnp.zeros_like(acc_ref)

    # Encoder contraction over the feat_in (K) axis, f32 accumulation on the
    # MXU.  The single scratch holds the implicit concat [z_p | z_s].
    acc_ref[:, 0:Lp] += jnp.dot(xp_ref[...], wp_ref[...],
                                preferred_element_type=jnp.float32)
    acc_ref[:, Lp:2 * Lp] += jnp.dot(xs_ref[...], ws_ref[...],
                                     preferred_element_type=jnp.float32)

    @pl.when(k == pl.num_programs(1) - 1)
    def _head():
        cdt = xs_ref.dtype                              # matmul-input dtype
        # (TM, 2*Lp) == torch.cat([x_p, x_s], dim=1) (+ encoder biases)
        z = (acc_ref[...] + benc_ref[...]).astype(cdt)
        lbl = lbl_ref[...]                              # (TM, 1) int32
        n_sub = w1_ref.shape[0]
        b1 = b1_ref[...]                                # (S, H1p) f32
        b2 = b2_ref[...]                                # (S, H2p)
        b3 = b3_ref[...]                                # (S, Cp)

        # Heads are tiny and VMEM-resident; every head runs on the tile and
        # each row picks its own with a cheap select (rows match exactly one
        # subject).  TODO(synk): for large subject counts, scalar-prefetch a
        # per-tile presence bitmap and pl.when-skip absent heads.

        # --- layer 1: single K=2L dot per subject -----------------------------
        h1 = jnp.zeros((z.shape[0], b1.shape[1]), jnp.float32)
        for s in range(n_sub):
            sel = lbl == s                              # (TM, 1) bool
            hs = (jnp.dot(z, w1_ref[s], preferred_element_type=jnp.float32)
                  + b1[s:s + 1, :])
            h1 = jnp.where(sel, hs, h1)
        h1 = _elu(h1).astype(cdt)   # nn.Dropout() in eval mode -> identity

        # --- layer 2 -----------------------------------------------------------
        h2 = jnp.zeros((h1.shape[0], b2.shape[1]), jnp.float32)
        for s in range(n_sub):
            sel = lbl == s
            hs = (jnp.dot(h1, w2_ref[s], preferred_element_type=jnp.float32)
                  + b2[s:s + 1, :])
            h2 = jnp.where(sel, hs, h2)
        h2 = _elu(h2).astype(cdt)

        # --- layer 3 -----------------------------------------------------------
        out = jnp.zeros((h2.shape[0], b3.shape[1]), jnp.float32)
        for s in range(n_sub):
            sel = lbl == s
            hs = (jnp.dot(h2, w3_ref[s], preferred_element_type=jnp.float32)
                  + b3[s:s + 1, :])
            out = jnp.where(sel, hs, out)
        o_ref[...] = out.astype(o_ref.dtype)


# --------------------------------- Cls_HEAD forward ------------------------------ #
def cls_head_forward(params, x_s, x_p, sub_module_label, sub_id, *,
                     tile_m=128, tile_k=4096, compute_dtype=jnp.bfloat16):
    B = x_s.shape[0]
    xs = x_s.reshape(B, -1)       # NCHW -> (B, C*H*W), like x.view(B, -1)
    xp = x_p.reshape(B, -1)
    F = xs.shape[1]
    L = params["shared_w"].shape[1]
    S, _, H1 = params["w1"].shape
    H2 = params["w2"].shape[2]
    C = params["w3"].shape[2]
    itemsize = jnp.dtype(compute_dtype).itemsize

    # Lane-dense padded sizes.
    Lp = _round_up(L, 128)
    H1p = _round_up(H1, 128)
    H2p = _round_up(H2, 128)
    Cp = _round_up(C, 128)

    # Batch tile: bf16 packs 16 rows per sublane vreg (8-bit: 32, f32: 8).
    sub_mult = {1: 32, 2: 16, 4: 8}.get(itemsize, 8)
    TM = min(_round_up(tile_m, sub_mult), _round_up(B, sub_mult))
    if _tpu_num_cores() >= 2 and B > sub_mult:
        # Guarantee >=2 batch tiles so both TensorCores (v7x) get work.
        TM = min(TM, max(sub_mult, _round_up(_cdiv(B, 2), sub_mult)))
    Bp = _round_up(B, TM)
    nbt = Bp // TM

    # Generation-aware VMEM plan for the feat_in (K) axis.
    budget = _tpu_vmem_budget_bytes()
    head_bytes = 2 * itemsize * S * (2 * Lp * H1p + H1p * H2p + H2p * Cp)
    head_bytes += 2 * 4 * S * (H1p + H2p + Cp)
    fixed = (head_bytes
             + TM * 2 * Lp * 4        # f32 latent accumulator (scratch)
             + 2 * TM * Cp * 4        # output double buffer
             + 2 * 2 * Lp * 4         # encoder bias
             + 2 * TM * 4)            # per-row labels

    def vmem_usage(tk):
        return (fixed
                + 2 * 2 * TM * tk * itemsize     # x_s / x_p tiles (double buffered)
                + 2 * 2 * tk * Lp * itemsize)    # shared / private W tiles

    Fp0 = _round_up(F, 128)
    if vmem_usage(Fp0) <= budget:
        # Encoder weights fully VMEM-resident: single K step, constant block
        # index -> the weight DMA happens once and is reused by all batch tiles.
        TK, nkt, Fp = Fp0, 1, Fp0
    else:
        tk = min(_round_up(tile_k, 128), Fp0)
        while tk > 128 and vmem_usage(tk) > budget:
            tk = max(128, _round_up(tk // 2, 128))
        nkt = _cdiv(Fp0, tk)
        TK = _round_up(_cdiv(Fp0, nkt), 128)    # evenly-split K tiles, minimal pad
        Fp = TK * nkt

    def pad2(a, r, c, dtype):
        a = a.astype(dtype)
        if a.shape == (r, c):
            return a
        return jnp.pad(a, ((0, r - a.shape[0]), (0, c - a.shape[1])))

    def pad3(a, r, c, dtype):   # pad the last two dims of (S, r0, c0)
        a = a.astype(dtype)
        if a.shape[1:] == (r, c):
            return a
        return jnp.pad(a, ((0, 0), (0, r - a.shape[1]), (0, c - a.shape[2])))

    xs_p = pad2(xs, Bp, Fp, compute_dtype)
    xp_p = pad2(xp, Bp, Fp, compute_dtype)
    ws = pad2(params["shared_w"], Fp, Lp, compute_dtype)
    wp = pad2(params["priv_w"][sub_id], Fp, Lp, compute_dtype)   # sub_id is static

    # Encoder biases in torch.cat([x_p, x_s], 1) order, kept f32.
    b_enc = jnp.concatenate(
        [pad2(params["priv_b"][sub_id].reshape(1, L), 1, Lp, jnp.float32),
         pad2(params["shared_b"].reshape(1, L), 1, Lp, jnp.float32)], axis=1)

    # Head layer-1 weights re-packed into the padded [z_p | z_s] row layout so
    # layer 1 is a single 2*Lp-deep dot per subject (zero rows pair with the
    # zero-padded latent columns, so numerics are unchanged).
    w1 = jnp.concatenate(
        [pad3(params["w1"][:, :L, :], Lp, H1p, compute_dtype),
         pad3(params["w1"][:, L:, :], Lp, H1p, compute_dtype)], axis=1)
    b1 = pad2(params["b1"], S, H1p, jnp.float32)
    w2 = pad3(params["w2"], H1p, H2p, compute_dtype)
    b2 = pad2(params["b2"], S, H2p, jnp.float32)
    w3 = pad3(params["w3"], H2p, Cp, compute_dtype)
    b3 = pad2(params["b3"], S, Cp, jnp.float32)

    labels2d = jnp.zeros((Bp, 1), jnp.int32).at[:B, 0].set(
        sub_module_label.astype(jnp.int32))

    grid_spec = pltpu.PrefetchScalarGridSpec(
        num_scalar_prefetch=0,
        grid=(nbt, nkt),
        in_specs=[
            pl.BlockSpec((TM, TK), lambda b, k: (b, k)),            # x_s tile
            pl.BlockSpec((TM, TK), lambda b, k: (b, k)),            # x_p tile
            pl.BlockSpec((TK, Lp), lambda b, k: (k, 0)),            # shared W
            pl.BlockSpec((TK, Lp), lambda b, k: (k, 0)),            # private W[sub_id]
            pl.BlockSpec((1, 2 * Lp), lambda b, k: (0, 0)),         # [b_p | b_s]
            pl.BlockSpec((TM, 1), lambda b, k: (b, 0)),             # per-row head labels
            pl.BlockSpec((S, 2 * Lp, H1p), lambda b, k: (0, 0, 0)),  # W1 (resident)
            pl.BlockSpec((S, H1p), lambda b, k: (0, 0)),            # b1
            pl.BlockSpec((S, H1p, H2p), lambda b, k: (0, 0, 0)),    # W2 (resident)
            pl.BlockSpec((S, H2p), lambda b, k: (0, 0)),            # b2
            pl.BlockSpec((S, H2p, Cp), lambda b, k: (0, 0, 0)),     # W3 (resident)
            pl.BlockSpec((S, Cp), lambda b, k: (0, 0)),             # b3
        ],
        out_specs=pl.BlockSpec((TM, Cp), lambda b, k: (b, 0)),      # lane-dense output
        scratch_shapes=[pltpu.VMEM((TM, 2 * Lp), jnp.float32)],     # [z_p | z_s] acc
    )

    out = pl.pallas_call(
        _fused_kernel,
        out_shape=jax.ShapeDtypeStruct((Bp, Cp), jnp.float32),
        grid_spec=grid_spec,
        compiler_params=pltpu.CompilerParams(
            dimension_semantics=("parallel", "arbitrary"),
            vmem_limit_bytes=budget,
        ),
    )(xs_p, xp_p, ws, wp, b_enc, labels2d, w1, b1, w2, b2, w3, b3)

    return out[:B, :C]


# --------------------------------- pure-JAX reference ----------------------------- #
def cls_head_reference(params, x_s, x_p, sub_module_label, sub_id):
    B = x_s.shape[0]
    xs = x_s.reshape(B, -1)
    xp = x_p.reshape(B, -1)
    z_s = xs @ params["shared_w"] + params["shared_b"]
    z_p = xp @ params["priv_w"][sub_id] + params["priv_b"][sub_id]
    x = jnp.concatenate([z_p, z_s], axis=1)

    def elu(v):
        return jnp.where(v > 0, v, jnp.exp(jnp.minimum(v, 0.0)) - 1.0)

    outs = []
    for i in range(B):
        s = int(sub_module_label[i])
        h = elu(x[i] @ params["w1"][s] + params["b1"][s])
        h = elu(h @ params["w2"][s] + params["b2"][s])
        outs.append(h @ params["w3"][s] + params["b3"][s])
    return jnp.stack(outs)


# ------------------------------------- setup ------------------------------------- #
def make_params(key, feat_in, latent_dim, hidden1, hidden2, n_classes, n_subjects):
    ks = jax.random.split(key, 10)
    s = 0.05
    return {
        # shared / private encoders (stand-in flatten+Linear, see TODO at top)
        "shared_w": s * jax.random.normal(ks[0], (feat_in, latent_dim), jnp.float32),
        "shared_b": s * jax.random.normal(ks[1], (latent_dim,), jnp.float32),
        "priv_w": s * jax.random.normal(ks[2], (n_subjects, feat_in, latent_dim), jnp.float32),
        "priv_b": s * jax.random.normal(ks[3], (n_subjects, latent_dim), jnp.float32),
        # per-subject heads: Linear(2L,h1) -> ELU -> Dropout -> Linear(h1,h2) -> ELU -> Linear(h2,C)
        "w1": s * jax.random.normal(ks[4], (n_subjects, 2 * latent_dim, hidden1), jnp.float32),
        "b1": s * jax.random.normal(ks[5], (n_subjects, hidden1), jnp.float32),
        "w2": s * jax.random.normal(ks[6], (n_subjects, hidden1, hidden2), jnp.float32),
        "b2": s * jax.random.normal(ks[7], (n_subjects, hidden2), jnp.float32),
        "w3": s * jax.random.normal(ks[8], (n_subjects, hidden2, n_classes), jnp.float32),
        "b3": s * jax.random.normal(ks[9], (n_subjects, n_classes), jnp.float32),
    }


if __name__ == "__main__":
    # Small configuration consistent with the module:
    #   inputsize = (ncha, size, _) -> NCHW inputs (B, ncha, size, size)
    B, ncha, size = 2, 4, 8
    latent_dim = 16
    hidden1, hidden2 = 32, 32
    n_classes = 4
    n_subjects = 3
    feat_in = ncha * size * size

    key = jax.random.PRNGKey(0)
    k_xs, k_xp, k_params = jax.random.split(key, 3)

    x_s = jax.random.normal(k_xs, (B, ncha, size, size), jnp.float32)
    x_p = jax.random.normal(k_xp, (B, ncha, size, size), jnp.float32)
    sub_module_label = jnp.array([0, 2], dtype=jnp.int32)   # per-sample head index
    sub_id = 1                                              # which private encoder

    params = make_params(k_params, feat_in, latent_dim, hidden1, hidden2,
                         n_classes, n_subjects)

    out = cls_head_forward(params, x_s, x_p, sub_module_label, sub_id)
    out = jax.block_until_ready(out)
    assert out.shape == (B, n_classes), out.shape

    ref = cls_head_reference(params, x_s, x_p, sub_module_label, sub_id)
    # bf16 matmul operands with f32 accumulation -> loose tolerance vs f32 ref.
    max_err = float(jnp.max(jnp.abs(out - ref)))
    assert jnp.allclose(out, ref, atol=5e-2, rtol=5e-2), max_err
    print("KERNEL_OK")
</pallas_src>

<mosaic_0001>
module attributes {stable_mosaic.version = 11 : i64} {
  func.func @_fused_kernel(%arg0: i32, %arg1: i32, %arg2: memref<16x256xbf16, #tpu.memory_space<vmem>>, %arg3: memref<16x256xbf16, #tpu.memory_space<vmem>>, %arg4: memref<256x128xbf16, #tpu.memory_space<vmem>>, %arg5: memref<256x128xbf16, #tpu.memory_space<vmem>>, %arg6: memref<1x256xf32, #tpu.memory_space<vmem>>, %arg7: memref<16x1xi32, #tpu.memory_space<vmem>>, %arg8: memref<3x256x128xbf16, #tpu.memory_space<vmem>>, %arg9: memref<3x128xf32, #tpu.memory_space<vmem>>, %arg10: memref<3x128x128xbf16, #tpu.memory_space<vmem>>, %arg11: memref<3x128xf32, #tpu.memory_space<vmem>>, %arg12: memref<3x128x128xbf16, #tpu.memory_space<vmem>>, %arg13: memref<3x128xf32, #tpu.memory_space<vmem>>, %arg14: memref<16x128xf32, #tpu.memory_space<vmem>>, %arg15: memref<16x256xf32, #tpu.memory_space<vmem>>) attributes {dimension_semantics = [#tpu.dimension_semantics<parallel>, #tpu.dimension_semantics<arbitrary>], iteration_bounds = array<i64: 1, 1>, scalar_prefetch = 0 : i64, scratch_operands = 1 : i64, tpu.core_type = #tpu.core_type<tc>, window_params = [{transform_indices = @transform_0, window_bounds = array<i64: 16, 256>}, {transform_indices = @transform_1, window_bounds = array<i64: 16, 256>}, {transform_indices = @transform_2, window_bounds = array<i64: 256, 128>}, {transform_indices = @transform_3, window_bounds = array<i64: 256, 128>}, {pipeline_mode = #tpu.pipeline_mode<synchronous>, transform_indices = @transform_4, window_bounds = array<i64: 1, 256>}, {transform_indices = @transform_5, window_bounds = array<i64: 16, 1>}, {pipeline_mode = #tpu.pipeline_mode<synchronous>, transform_indices = @transform_6, window_bounds = array<i64: 3, 256, 128>}, {pipeline_mode = #tpu.pipeline_mode<synchronous>, transform_indices = @transform_7, window_bounds = array<i64: 3, 128>}, {pipeline_mode = #tpu.pipeline_mode<synchronous>, transform_indices = @transform_8, window_bounds = array<i64: 3, 128, 128>}, {pipeline_mode = #tpu.pipeline_mode<synchronous>, transform_indices = @transform_9, window_bounds = array<i64: 3, 128>}, {pipeline_mode = #tpu.pipeline_mode<synchronous>, transform_indices = @transform_10, window_bounds = array<i64: 3, 128, 128>}, {pipeline_mode = #tpu.pipeline_mode<synchronous>, transform_indices = @transform_11, window_bounds = array<i64: 3, 128>}, {transform_indices = @transform_12, window_bounds = array<i64: 16, 128>}]} {
    %c0_i32 = arith.constant 0 : i32
    %0 = arith.cmpi eq, %arg1, %c0_i32 : i32
    %1 = arith.extui %0 : i1 to i32
    %c0_i32_0 = arith.constant 0 : i32
    %2 = arith.cmpi ne, %1, %c0_i32_0 : i32
    scf.if %2 {
      %cst_18 = arith.constant 0.000000e+00 : f32
      %18 = vector.broadcast %cst_18 : f32 to vector<16x256xf32>
      %c0_19 = arith.constant 0 : index
      %c0_20 = arith.constant 0 : index
      %19 = vector.load %arg15[%c0_19, %c0_20] : memref<16x256xf32, #tpu.memory_space<vmem>>, vector<16x256xf32>
      tpu.vector_store %arg15[%c0_19, %c0_20], %18 {strides = array<i32>} : memref<16x256xf32, #tpu.memory_space<vmem>>, vector<16x256xf32>,
    } else {
    }
    %c0 = arith.constant 0 : index
    %c0_1 = arith.constant 0 : index
    %3 = vector.load %arg15[%c0, %c0_1] : memref<16x256xf32, #tpu.memory_space<vmem>>, vector<16x128xf32>
    %c0_2 = arith.constant 0 : index
    %c0_3 = arith.constant 0 : index
    %4 = vector.load %arg3[%c0_2, %c0_3] : memref<16x256xbf16, #tpu.memory_space<vmem>>, vector<16x256xbf16>
    %c0_4 = arith.constant 0 : index
    %c0_5 = arith.constant 0 : index
    %5 = vector.load %arg5[%c0_4, %c0_5] : memref<256x128xbf16, #tpu.memory_space<vmem>>, vector<256x128xbf16>
    %cst = arith.constant dense<0.000000e+00> : vector<16x128xf32>
    %6 = tpu.matmul %4, %5, %cst {dimension_numbers = #tpu.dot_dimension_numbers<[1], [0], [0], [1], [0, 0, 1, 1], [], []>} : vector<16x256xbf16>, vector<256x128xbf16>, vector<16x128xf32> -> vector<16x128xf32>
    %7 = arith.addf %3, %6 : vector<16x128xf32>
    %c0_6 = arith.constant 0 : index
    %c0_7 = arith.constant 0 : index
    %8 = vector.load %arg15[%c0_6, %c0_7] : memref<16x256xf32, #tpu.memory_space<vmem>>, vector<16x128xf32>
    tpu.vector_store %arg15[%c0_6, %c0_7], %7 {strides = array<i32>} : memref<16x256xf32, #tpu.memory_space<vmem>>, vector<16x128xf32>,
    %c0_8 = arith.constant 0 : index
    %c128 = arith.constant 128 : index
    %9 = vector.load %arg15[%c0_8, %c128] : memref<16x256xf32, #tpu.memory_space<vmem>>, vector<16x128xf32>
    %c0_9 = arith.constant 0 : index
    %c0_10 = arith.constant 0 : index
    %10 = vector.load %arg2[%c0_9, %c0_10] : memref<16x256xbf16, #tpu.memory_space<vmem>>, vector<16x256xbf16>
    %c0_11 = arith.constant 0 : index
    %c0_12 = arith.constant 0 : index
    %11 = vector.load %arg4[%c0_11, %c0_12] : memref<256x128xbf16, #tpu.memory_space<vmem>>, vector<256x128xbf16>
    %cst_13 = arith.constant dense<0.000000e+00> : vector<16x128xf32>
    %12 = tpu.matmul %10, %11, %cst_13 {dimension_numbers = #tpu.dot_dimension_numbers<[1], [0], [0], [1], [0, 0, 1, 1], [], []>} : vector<16x256xbf16>, vector<256x128xbf16>, vector<16x128xf32> -> vector<16x128xf32>
    %13 = arith.addf %9, %12 : vector<16x128xf32>
    %c0_14 = arith.constant 0 : index
    %c128_15 = arith.constant 128 : index
    %14 = vector.load %arg15[%c0_14, %c128_15] : memref<16x256xf32, #tpu.memory_space<vmem>>, vector<16x128xf32>
    tpu.vector_store %arg15[%c0_14, %c128_15], %13 {strides = array<i32>} : memref<16x256xf32, #tpu.memory_space<vmem>>, vector<16x128xf32>,
    %c0_i32_16 = arith.constant 0 : i32
    %15 = arith.cmpi eq, %arg1, %c0_i32_16 : i32
    %16 = arith.extui %15 : i1 to i32
    %c0_i32_17 = arith.constant 0 : i32
    %17 = arith.cmpi ne, %16, %c0_i32_17 : i32
    scf.if %17 {
      %c0_18 = arith.constant 0 : index
      %c0_19 = arith.constant 0 : index
      %18 = vector.load %arg15[%c0_18, %c0_19] : memref<16x256xf32, #tpu.memory_space<vmem>>, vector<16x256xf32>
      %c0_20 = arith.constant 0 : index
      %c0_21 = arith.constant 0 : index
      %19 = vector.load %arg6[%c0_20, %c0_21] : memref<1x256xf32, #tpu.memory_space<vmem>>, vector<1x256xf32>
      %20 = vector.broadcast %19 : vector<1x256xf32> to vector<16x256xf32>
      %21 = arith.addf %18, %20 : vector<16x256xf32>
      %22 = arith.truncf %21 : vector<16x256xf32> to vector<16x256xbf16>
      %c0_22 = arith.constant 0 : index
      %c0_23 = arith.constant 0 : index
      %23 = vector.load %arg7[%c0_22, %c0_23] : memref<16x1xi32, #tpu.memory_space<vmem>>, vector<16x1xi32>
      %c0_24 = arith.constant 0 : index
      %c0_25 = arith.constant 0 : index
      %24 = vector.load %arg9[%c0_24, %c0_25] : memref<3x128xf32, #tpu.memory_space<vmem>>, vector<3x128xf32>
      %c0_26 = arith.constant 0 : index
      %c0_27 = arith.constant 0 : index
      %25 = vector.load %arg11[%c0_26, %c0_27] : memref<3x128xf32, #tpu.memory_space<vmem>>, vector<3x128xf32>
      %c0_28 = arith.constant 0 : index
      %c0_29 = arith.constant 0 : index
      %26 = vector.load %arg13[%c0_28, %c0_29] : memref<3x128xf32, #tpu.memory_space<vmem>>, vector<3x128xf32>
      %cst_30 = arith.constant 0.000000e+00 : f32
      %27 = vector.broadcast %cst_30 : f32 to vector<16x128xf32>
      %c0_i32_31 = arith.constant 0 : i32
      %28 = vector.broadcast %c0_i32_31 : i32 to vector<16x1xi32>
      %29 = arith.cmpi eq, %23, %28 : vector<16x1xi32>
      %c0_32 = arith.constant 0 : index
      %c0_33 = arith.constant 0 : index
      %c0_34 = arith.constant 0 : index
      %30 = vector.load %arg8[%c0_32, %c0_33, %c0_34] : memref<3x256x128xbf16, #tpu.memory_space<vmem>>, vector<1x256x128xbf16>
      %31 = vector.shape_cast %30 : vector<1x256x128xbf16> to vector<256x128xbf16>
      %cst_35 = arith.constant dense<0.000000e+00> : vector<16x128xf32>
      %32 = tpu.matmul %22, %31, %cst_35 {dimension_numbers = #tpu.dot_dimension_numbers<[1], [0], [0], [1], [0, 0, 1, 1], [], []>} : vector<16x256xbf16>, vector<256x128xbf16>, vector<16x128xf32> -> vector<16x128xf32>
      %33 = vector.extract_strided_slice %24 {offsets = [0, 0], sizes = [1, 128], strides = [1, 1]} : vector<3x128xf32> to vector<1x128xf32>
      %34 = vector.broadcast %33 : vector<1x128xf32> to vector<16x128xf32>
      %35 = arith.addf %32, %34 : vector<16x128xf32>
      %36 = vector.shape_cast %29 : vector<16x1xi1> to vector<16x1xi1>
      %37 = vector.broadcast %36 : vector<16x1xi1> to vector<16x128xi1>
      %38 = arith.select %37, %35, %27 : vector<16x128xi1>, vector<16x128xf32>
      %c1_i32 = arith.constant 1 : i32
      %39 = vector.broadcast %c1_i32 : i32 to vector<16x1xi32>
      %40 = arith.cmpi eq, %23, %39 : vector<16x1xi32>
      %c1 = arith.constant 1 : index
      %c0_36 = arith.constant 0 : index
      %c0_37 = arith.constant 0 : index
      %41 = vector.load %arg8[%c1, %c0_36, %c0_37] : memref<3x256x128xbf16, #tpu.memory_space<vmem>>, vector<1x256x128xbf16>
      %42 = vector.shape_cast %41 : vector<1x256x128xbf16> to vector<256x128xbf16>
      %cst_38 = arith.constant dense<0.000000e+00> : vector<16x128xf32>
      %43 = tpu.matmul %22, %42, %cst_38 {dimension_numbers = #tpu.dot_dimension_numbers<[1], [0], [0], [1], [0, 0, 1, 1], [], []>} : vector<16x256xbf16>, vector<256x128xbf16>, vector<16x128xf32> -> vector<16x128xf32>
      %44 = vector.extract_strided_slice %24 {offsets = [1, 0], sizes = [1, 128], strides = [1, 1]} : vector<3x128xf32> to vector<1x128xf32>
      %45 = vector.broadcast %44 : vector<1x128xf32> to vector<16x128xf32>
      %46 = arith.addf %43, %45 : vector<16x128xf32>
      %47 = vector.shape_cast %40 : vector<16x1xi1> to vector<16x1xi1>
      %48 = vector.broadcast %47 : vector<16x1xi1> to vector<16x128xi1>
      %49 = arith.select %48, %46, %38 : vector<16x128xi1>, vector<16x128xf32>
      %c2_i32 = arith.constant 2 : i32
      %50 = vector.broadcast %c2_i32 : i32 to vector<16x1xi32>
      %51 = arith.cmpi eq, %23, %50 : vector<16x1xi32>
      %c2 = arith.constant 2 : index
      %c0_39 = arith.constant 0 : index
      %c0_40 = arith.constant 0 : index
      %52 = vector.load %arg8[%c2, %c0_39, %c0_40] : memref<3x256x128xbf16, #tpu.memory_space<vmem>>, vector<1x256x128xbf16>
      %53 = vector.shape_cast %52 : vector<1x256x128xbf16> to vector<256x128xbf16>
      %cst_41 = arith.constant dense<0.000000e+00> : vector<16x128xf32>
      %54 = tpu.matmul %22, %53, %cst_41 {dimension_numbers = #tpu.dot_dimension_numbers<[1], [0], [0], [1], [0, 0, 1, 1], [], []>} : vector<16x256xbf16>, vector<256x128xbf16>, vector<16x128xf32> -> vector<16x128xf32>
      %55 = vector.extract_strided_slice %24 {offsets = [2, 0], sizes = [1, 128], strides = [1, 1]} : vector<3x128xf32> to vector<1x128xf32>
      %56 = vector.broadcast %55 : vector<1x128xf32> to vector<16x128xf32>
      %57 = arith.addf %54, %56 : vector<16x128xf32>
      %58 = vector.shape_cast %51 : vector<16x1xi1> to vector<16x1xi1>
      %59 = vector.broadcast %58 : vector<16x1xi1> to vector<16x128xi1>
      %60 = arith.select %59, %57, %49 : vector<16x128xi1>, vector<16x128xf32>
      %cst_42 = arith.constant 0.000000e+00 : f32
      %61 = vector.broadcast %cst_42 : f32 to vector<16x128xf32>
      %62 = arith.cmpf ogt, %60, %61 : vector<16x128xf32>
      %cst_43 = arith.constant 0.000000e+00 : f32
      %63 = vector.broadcast %cst_43 : f32 to vector<16x128xf32>
      %64 = arith.minimumf %60, %63 : vector<16x128xf32>
      %65 = math.exp %64 : vector<16x128xf32>
      %cst_44 = arith.constant 1.000000e+00 : f32
      %66 = vector.broadcast %cst_44 : f32 to vector<16x128xf32>
      %67 = arith.subf %65, %66 : vector<16x128xf32>
      %68 = arith.select %62, %60, %67 : vector<16x128xi1>, vector<16x128xf32>
      %69 = arith.truncf %68 : vector<16x128xf32> to vector<16x128xbf16>
      %cst_45 = arith.constant 0.000000e+00 : f32
      %70 = vector.broadcast %cst_45 : f32 to vector<16x128xf32>
      %c0_i32_46 = arith.constant 0 : i32
      %71 = vector.broadcast %c0_i32_46 : i32 to vector<16x1xi32>
      %72 = arith.cmpi eq, %23, %71 : vector<16x1xi32>
      %c0_47 = arith.constant 0 : index
      %c0_48 = arith.constant 0 : index
      %c0_49 = arith.constant 0 : index
      %73 = vector.load %arg10[%c0_47, %c0_48, %c0_49] : memref<3x128x128xbf16, #tpu.memory_space<vmem>>, vector<1x128x128xbf16>
      %74 = vector.shape_cast %73 : vector<1x128x128xbf16> to vector<128x128xbf16>
      %cst_50 = arith.constant dense<0.000000e+00> : vector<16x128xf32>
      %75 = tpu.matmul %69, %74, %cst_50 {dimension_numbers = #tpu.dot_dimension_numbers<[1], [0], [0], [1], [0, 0, 1, 1], [], []>} : vector<16x128xbf16>, vector<128x128xbf16>, vector<16x128xf32> -> vector<16x128xf32>
      %76 = vector.extract_strided_slice %25 {offsets = [0, 0], sizes = [1, 128], strides = [1, 1]} : vector<3x128xf32> to vector<1x128xf32>
      %77 = vector.broadcast %76 : vector<1x128xf32> to vector<16x128xf32>
      %78 = arith.addf %75, %77 : vector<16x128xf32>
      %79 = vector.shape_cast %72 : vector<16x1xi1> to vector<16x1xi1>
      %80 = vector.broadcast %79 : vector<16x1xi1> to vector<16x128xi1>
      %81 = arith.select %80, %78, %70 : vector<16x128xi1>, vector<16x128xf32>
      %c1_i32_51 = arith.constant 1 : i32
      %82 = vector.broadcast %c1_i32_51 : i32 to vector<16x1xi32>
      %83 = arith.cmpi eq, %23, %82 : vector<16x1xi32>
      %c1_52 = arith.constant 1 : index
      %c0_53 = arith.constant 0 : index
      %c0_54 = arith.constant 0 : index
      %84 = vector.load %arg10[%c1_52, %c0_53, %c0_54] : memref<3x128x128xbf16, #tpu.memory_space<vmem>>, vector<1x128x128xbf16>
      %85 = vector.shape_cast %84 : vector<1x128x128xbf16> to vector<128x128xbf16>
      %cst_55 = arith.constant dense<0.000000e+00> : vector<16x128xf32>
      %86 = tpu.matmul %69, %85, %cst_55 {dimension_numbers = #tpu.dot_dimension_numbers<[1], [0], [0], [1], [0, 0, 1, 1], [], []>} : vector<16x128xbf16>, vector<128x128xbf16>, vector<16x128xf32> -> vector<16x128xf32>
      %87 = vector.extract_strided_slice %25 {offsets = [1, 0], sizes = [1, 128], strides = [1, 1]} : vector<3x128xf32> to vector<1x128xf32>
      %88 = vector.broadcast %87 : vector<1x128xf32> to vector<16x128xf32>
      %89 = arith.addf %86, %88 : vector<16x128xf32>
      %90 = vector.shape_cast %83 : vector<16x1xi1> to vector<16x1xi1>
      %91 = vector.broadcast %90 : vector<16x1xi1> to vector<16x128xi1>
      %92 = arith.select %91, %89, %81 : vector<16x128xi1>, vector<16x128xf32>
      %c2_i32_56 = arith.constant 2 : i32
      %93 = vector.broadcast %c2_i32_56 : i32 to vector<16x1xi32>
      %94 = arith.cmpi eq, %23, %93 : vector<16x1xi32>
      %c2_57 = arith.constant 2 : index
      %c0_58 = arith.constant 0 : index
      %c0_59 = arith.constant 0 : index
      %95 = vector.load %arg10[%c2_57, %c0_58, %c0_59] : memref<3x128x128xbf16, #tpu.memory_space<vmem>>, vector<1x128x128xbf16>
      %96 = vector.shape_cast %95 : vector<1x128x128xbf16> to vector<128x128xbf16>
      %cst_60 = arith.constant dense<0.000000e+00> : vector<16x128xf32>
      %97 = tpu.matmul %69, %96, %cst_60 {dimension_numbers = #tpu.dot_dimension_numbers<[1], [0], [0], [1], [0, 0, 1, 1], [], []>} : vector<16x128xbf16>, vector<128x128xbf16>, vector<16x128xf32> -> vector<16x128xf32>
      %98 = vector.extract_strided_slice %25 {offsets = [2, 0], sizes = [1, 128], strides = [1, 1]} : vector<3x128xf32> to vector<1x128xf32>
      %99 = vector.broadcast %98 : vector<1x128xf32> to vector<16x128xf32>
      %100 = arith.addf %97, %99 : vector<16x128xf32>
      %101 = vector.shape_cast %94 : vector<16x1xi1> to vector<16x1xi1>
      %102 = vector.broadcast %101 : vector<16x1xi1> to vector<16x128xi1>
      %103 = arith.select %102, %100, %92 : vector<16x128xi1>, vector<16x128xf32>
      %cst_61 = arith.constant 0.000000e+00 : f32
      %104 = vector.broadcast %cst_61 : f32 to vector<16x128xf32>
      %105 = arith.cmpf ogt, %103, %104 : vector<16x128xf32>
      %cst_62 = arith.constant 0.000000e+00 : f32
      %106 = vector.broadcast %cst_62 : f32 to vector<16x128xf32>
      %107 = arith.minimumf %103, %106 : vector<16x128xf32>
      %108 = math.exp %107 : vector<16x128xf32>
      %cst_63 = arith.constant 1.000000e+00 : f32
      %109 = vector.broadcast %cst_63 : f32 to vector<16x128xf32>
      %110 = arith.subf %108, %109 : vector<16x128xf32>
      %111 = arith.select %105, %103, %110 : vector<16x128xi1>, vector<16x128xf32>
      %112 = arith.truncf %111 : vector<16x128xf32> to vector<16x128xbf16>
      %cst_64 = arith.constant 0.000000e+00 : f32
      %113 = vector.broadcast %cst_64 : f32 to vector<16x128xf32>
      %c0_i32_65 = arith.constant 0 : i32
      %114 = vector.broadcast %c0_i32_65 : i32 to vector<16x1xi32>
      %115 = arith.cmpi eq, %23, %114 : vector<16x1xi32>
      %c0_66 = arith.constant 0 : index
      %c0_67 = arith.constant 0 : index
      %c0_68 = arith.constant 0 : index
      %116 = vector.load %arg12[%c0_66, %c0_67, %c0_68] : memref<3x128x128xbf16, #tpu.memory_space<vmem>>, vector<1x128x128xbf16>
      %117 = vector.shape_cast %116 : vector<1x128x128xbf16> to vector<128x128xbf16>
      %cst_69 = arith.constant dense<0.000000e+00> : vector<16x128xf32>
      %118 = tpu.matmul %112, %117, %cst_69 {dimension_numbers = #tpu.dot_dimension_numbers<[1], [0], [0], [1], [0, 0, 1, 1], [], []>} : vector<16x128xbf16>, vector<128x128xbf16>, vector<16x128xf32> -> vector<16x128xf32>
      %119 = vector.extract_strided_slice %26 {offsets = [0, 0], sizes = [1, 128], strides = [1, 1]} : vector<3x128xf32> to vector<1x128xf32>
      %120 = vector.broadcast %119 : vector<1x128xf32> to vector<16x128xf32>
      %121 = arith.addf %118, %120 : vector<16x128xf32>
      %122 = vector.shape_cast %115 : vector<16x1xi1> to vector<16x1xi1>
      %123 = vector.broadcast %122 : vector<16x1xi1> to vector<16x128xi1>
      %124 = arith.select %123, %121, %113 : vector<16x128xi1>, vector<16x128xf32>
      %c1_i32_70 = arith.constant 1 : i32
      %125 = vector.broadcast %c1_i32_70 : i32 to vector<16x1xi32>
      %126 = arith.cmpi eq, %23, %125 : vector<16x1xi32>
      %c1_71 = arith.constant 1 : index
      %c0_72 = arith.constant 0 : index
      %c0_73 = arith.constant 0 : index
      %127 = vector.load %arg12[%c1_71, %c0_72, %c0_73] : memref<3x128x128xbf16, #tpu.memory_space<vmem>>, vector<1x128x128xbf16>
      %128 = vector.shape_cast %127 : vector<1x128x128xbf16> to vector<128x128xbf16>
      %cst_74 = arith.constant dense<0.000000e+00> : vector<16x128xf32>
      %129 = tpu.matmul %112, %128, %cst_74 {dimension_numbers = #tpu.dot_dimension_numbers<[1], [0], [0], [1], [0, 0, 1, 1], [], []>} : vector<16x128xbf16>, vector<128x128xbf16>, vector<16x128xf32> -> vector<16x128xf32>
      %130 = vector.extract_strided_slice %26 {offsets = [1, 0], sizes = [1, 128], strides = [1, 1]} : vector<3x128xf32> to vector<1x128xf32>
      %131 = vector.broadcast %130 : vector<1x128xf32> to vector<16x128xf32>
      %132 = arith.addf %129, %131 : vector<16x128xf32>
      %133 = vector.shape_cast %126 : vector<16x1xi1> to vector<16x1xi1>
      %134 = vector.broadcast %133 : vector<16x1xi1> to vector<16x128xi1>
      %135 = arith.select %134, %132, %124 : vector<16x128xi1>, vector<16x128xf32>
      %c2_i32_75 = arith.constant 2 : i32
      %136 = vector.broadcast %c2_i32_75 : i32 to vector<16x1xi32>
      %137 = arith.cmpi eq, %23, %136 : vector<16x1xi32>
      %c2_76 = arith.constant 2 : index
      %c0_77 = arith.constant 0 : index
      %c0_78 = arith.constant 0 : index
      %138 = vector.load %arg12[%c2_76, %c0_77, %c0_78] : memref<3x128x128xbf16, #tpu.memory_space<vmem>>, vector<1x128x128xbf16>
      %139 = vector.shape_cast %138 : vector<1x128x128xbf16> to vector<128x128xbf16>
      %cst_79 = arith.constant dense<0.000000e+00> : vector<16x128xf32>
      %140 = tpu.matmul %112, %139, %cst_79 {dimension_numbers = #tpu.dot_dimension_numbers<[1], [0], [0], [1], [0, 0, 1, 1], [], []>} : vector<16x128xbf16>, vector<128x128xbf16>, vector<16x128xf32> -> vector<16x128xf32>
      %141 = vector.extract_strided_slice %26 {offsets = [2, 0], sizes = [1, 128], strides = [1, 1]} : vector<3x128xf32> to vector<1x128xf32>
      %142 = vector.broadcast %141 : vector<1x128xf32> to vector<16x128xf32>
      %143 = arith.addf %140, %142 : vector<16x128xf32>
      %144 = vector.shape_cast %137 : vector<16x1xi1> to vector<16x1xi1>
      %145 = vector.broadcast %144 : vector<16x1xi1> to vector<16x128xi1>
      %146 = arith.select %145, %143, %135 : vector<16x128xi1>, vector<16x128xf32>
      %c0_80 = arith.constant 0 : index
      %c0_81 = arith.constant 0 : index
      %147 = vector.load %arg14[%c0_80, %c0_81] : memref<16x128xf32, #tpu.memory_space<vmem>>, vector<16x128xf32>
      tpu.vector_store %arg14[%c0_80, %c0_81], %146 {strides = array<i32>} : memref<16x128xf32, #tpu.memory_space<vmem>>, vector<16x128xf32>,
    } else {
    }
    return
  }
  func.func @transform_0(%arg0: i32, %arg1: i32) -> (i32, i32) {
    %c0_i32 = arith.constant 0 : i32
    return %arg0, %arg1 : i32, i32
  }
  func.func @transform_1(%arg0: i32, %arg1: i32) -> (i32, i32) {
    %c0_i32 = arith.constant 0 : i32
    return %arg0, %arg1 : i32, i32
  }
  func.func @transform_2(%arg0: i32, %arg1: i32) -> (i32, i32) {
    %c0_i32 = arith.constant 0 : i32
    %c0_i32_0 = arith.constant 0 : i32
    return %arg1, %c0_i32 : i32, i32
  }
  func.func @transform_3(%arg0: i32, %arg1: i32) -> (i32, i32) {
    %c0_i32 = arith.constant 0 : i32
    %c0_i32_0 = arith.constant 0 : i32
    return %arg1, %c0_i32 : i32, i32
  }
  func.func @transform_4(%arg0: i32, %arg1: i32) -> (i32, i32) {
    %c0_i32 = arith.constant 0 : i32
    %c0_i32_0 = arith.constant 0 : i32
    %c0_i32_1 = arith.constant 0 : i32
    return %c0_i32, %c0_i32_0 : i32, i32
  }
  func.func @transform_5(%arg0: i32, %arg1: i32) -> (i32, i32) {
    %c0_i32 = arith.constant 0 : i32
    %c0_i32_0 = arith.constant 0 : i32
    return %arg0, %c0_i32 : i32, i32
  }
  func.func @transform_6(%arg0: i32, %arg1: i32) -> (i32, i32, i32) {
    %c0_i32 = arith.constant 0 : i32
    %c0_i32_0 = arith.constant 0 : i32
    %c0_i32_1 = arith.constant 0 : i32
    %c0_i32_2 = arith.constant 0 : i32
    return %c0_i32, %c0_i32_0, %c0_i32_1 : i32, i32, i32
  }
  func.func @transform_7(%arg0: i32, %arg1: i32) -> (i32, i32) {
    %c0_i32 = arith.constant 0 : i32
    %c0_i32_0 = arith.constant 0 : i32
    %c0_i32_1 = arith.constant 0 : i32
    return %c0_i32, %c0_i32_0 : i32, i32
  }
  func.func @transform_8(%arg0: i32, %arg1: i32) -> (i32, i32, i32) {
    %c0_i32 = arith.constant 0 : i32
    %c0_i32_0 = arith.constant 0 : i32
    %c0_i32_1 = arith.constant 0 : i32
    %c0_i32_2 = arith.constant 0 : i32
    return %c0_i32, %c0_i32_0, %c0_i32_1 : i32, i32, i32
  }
  func.func @transform_9(%arg0: i32, %arg1: i32) -> (i32, i32) {
    %c0_i32 = arith.constant 0 : i32
    %c0_i32_0 = arith.constant 0 : i32
    %c0_i32_1 = arith.constant 0 : i32
    return %c0_i32, %c0_i32_0 : i32, i32
  }
  func.func @transform_10(%arg0: i32, %arg1: i32) -> (i32, i32, i32) {
    %c0_i32 = arith.constant 0 : i32
    %c0_i32_0 = arith.constant 0 : i32
    %c0_i32_1 = arith.constant 0 : i32
    %c0_i32_2 = arith.constant 0 : i32
    return %c0_i32, %c0_i32_0, %c0_i32_1 : i32, i32, i32
  }
  func.func @transform_11(%arg0: i32, %arg1: i32) -> (i32, i32) {
    %c0_i32 = arith.constant 0 : i32
    %c0_i32_0 = arith.constant 0 : i32
    %c0_i32_1 = arith.constant 0 : i32
    return %c0_i32, %c0_i32_0 : i32, i32
  }
  func.func @transform_12(%arg0: i32, %arg1: i32) -> (i32, i32) {
    %c0_i32 = arith.constant 0 : i32
    %c0_i32_0 = arith.constant 0 : i32
    return %arg0, %c0_i32 : i32, i32
  }
}

</mosaic_0001>

<llo_original>
// kernel: tpu_custom_call.1
$region0: #{tpu_custom_call.1}
  #allocation0 [shape = 'u32[]', space=smem, size = 0x4, offset = 0x4, fixed_abs, tag = 'smem constant byte address 0x4 - core index']
  #allocation1 [shape = 'u32[144,128]{1,0:T(1,128)}', space=vmem, size = 0x12000, scoped, tag = 'internal scratch']
  #allocation2 [shape = 'f32[16,256]{1,0:T(8,128)}', space=vmem, size = 0x4000, scoped, tag = 'scratch operand']
  %s0 = inlined_call_operand.vmem [shape: bf16[16,256], index: 0, kind: input, shape index: {}]
  %s1 = inlined_call_operand.hbm [shape: bf16[16,256], index: 1, kind: input, shape index: {}]
  %s2 = inlined_call_operand.hbm [shape: bf16[256,128], index: 2, kind: input, shape index: {}]
  %s3 = inlined_call_operand.hbm [shape: bf16[256,128], index: 3, kind: input, shape index: {}]
  %s4 = inlined_call_operand.vmem [shape: f32[1,256], index: 4, kind: input, shape index: {}]
  %s5 = inlined_call_operand.vmem [shape: s32[16,1], index: 5, kind: input, shape index: {}]
  %s6 = inlined_call_operand.hbm [shape: bf16[3,256,128], index: 6, kind: input, shape index: {}]
  %s7 = inlined_call_operand.vmem [shape: f32[3,128], index: 7, kind: input, shape index: {}]
  %s8 = inlined_call_operand.hbm [shape: bf16[3,128,128], index: 8, kind: input, shape index: {}]
  %s9 = inlined_call_operand.vmem [shape: f32[3,128], index: 9, kind: input, shape index: {}]
  %s10 = inlined_call_operand.hbm [shape: bf16[3,128,128], index: 10, kind: input, shape index: {}]
  %s11 = inlined_call_operand.vmem [shape: f32[3,128], index: 11, kind: input, shape index: {}]
  %s12 = inlined_call_operand.hbm [shape: f32[16,128], index: 12, kind: output, shape index: {}]
  %s13 = sld [smem:[#allocation0]]
  $region90: #{tpu_custom_call.1} parent=0
    _
  %s15 = ssub.s32 1, %s13
  %s16 = scalar_select 0, %s15, %s13
  $region1: #{tpu_custom_call.1} parent=0
    #allocation3 [shape = 'u8[8192]{0}', space=vmem, size = 0x2000, scoped, tag = 'input window, operand 1, single buffered']
    #allocation4 [shape = 's32[1]{0}', space=sflag, size = 0x4, scoped, tag = 'scoped memory for tpu_custom_call.1']
    #allocation5 [shape = 's32[1]{0}', space=sflag, size = 0x4, scoped, tag = 'scoped memory for tpu_custom_call.1']
    #allocation6 [shape = 'u8[65536]{0}', space=vmem, size = 0x10000, scoped, tag = 'input window, operand 2, single buffered']
    #allocation7 [shape = 's32[1]{0}', space=sflag, size = 0x4, scoped, tag = 'scoped memory for tpu_custom_call.1']
    #allocation8 [shape = 'u8[65536]{0}', space=vmem, size = 0x10000, scoped, tag = 'input window, operand 3, single buffered']
    #allocation9 [shape = 'u8[196608]{0}', space=vmem, size = 0x30000, scoped, tag = 'input window, operand 6, single buffered']
    #allocation10 [shape = 's32[1]{0}', space=sflag, size = 0x4, scoped, tag = 'scoped memory for tpu_custom_call.1']
    #allocation11 [shape = 'u8[98304]{0}', space=vmem, size = 0x18000, scoped, tag = 'input window, operand 8, single buffered']
    #allocation12 [shape = 'u8[98304]{0}', space=vmem, size = 0x18000, scoped, tag = 'input window, operand 10, single buffered']
    #allocation13 [shape = 's32[1]{0}', space=sflag, size = 0x4, scoped, tag = 'scoped memory for tpu_custom_call.1']
    #allocation14 [shape = 'u8[8192]{0}', space=vmem, size = 0x2000, scoped, tag = 'output window, operand 0, single buffered']
    %17 = vsyncpa [#allocation4], 0
    %18 = vsyncpa [#allocation7], 0
    %19 = vsyncpa [#allocation10], 0
    %20 = vsyncpa [#allocation13], 0
    %21 = vsyncpa [#allocation5], 0
    // Predicated region
    $region2: #{tpu_custom_call.1} parent=1 // pred_check
      _
    $region3: #{tpu_custom_call.1} parent=1 // pred_check_branch
      %23 = sbr.rel (0) target = $region5
    $region4: #{tpu_custom_call.1} parent=1 // pred_region
      _
    $region5: #{tpu_custom_call.1} parent=1 // pred_fallthru
      _
    // Predicated region
    $region6: #{tpu_custom_call.1} parent=1 // pred_check
      _
    $region7: #{tpu_custom_call.1} parent=1 // pred_check_branch
      %25 = sbr.rel (0) target = $region9
    $region8: #{tpu_custom_call.1} parent=1 // pred_region
      %s27 = ssub.s32 256, 256
      %28 = vsyncadd [#allocation4], %s27
      %s29 = sshll.u32 [#allocation3], 4
      %s30 = int_to_ptr.vmem [resolvable:$true] %s29
      %35 = dma.hbm_to_vmem [thread:$0]  %s1, 256, %s30, [#allocation4], 128, 128, 8
    $region9: #{tpu_custom_call.1} parent=1 // pred_fallthru
      _
    // Predicated region
    $region10: #{tpu_custom_call.1} parent=1 // pred_check
      _
    $region11: #{tpu_custom_call.1} parent=1 // pred_check_branch
      %37 = sbr.rel (0) target = $region13
    $region12: #{tpu_custom_call.1} parent=1 // pred_region
      %s39 = ssub.s32 2048, 2048
      %40 = vsyncadd [#allocation7], %s39
      %s41 = sshll.u32 [#allocation6], 4
      %s42 = int_to_ptr.vmem [resolvable:$true] %s41
      %47 = dma.hbm_to_vmem [thread:$0]  %s2, 2048, %s42, [#allocation7], 64, 64, 4
    $region13: #{tpu_custom_call.1} parent=1 // pred_fallthru
      _
    // Predicated region
    $region14: #{tpu_custom_call.1} parent=1 // pred_check
      _
    $region15: #{tpu_custom_call.1} parent=1 // pred_check_branch
      %49 = sbr.rel (0) target = $region17
    $region16: #{tpu_custom_call.1} parent=1 // pred_region
      %s51 = ssub.s32 2048, 2048
      %52 = vsyncadd [#allocation7], %s51
      %s53 = sshll.u32 [#allocation8], 4
      %s54 = int_to_ptr.vmem [resolvable:$true] %s53
      %59 = dma.hbm_to_vmem [thread:$0]  %s3, 2048, %s54, [#allocation7], 64, 64, 4
    $region17: #{tpu_custom_call.1} parent=1 // pred_fallthru
      _
    // Predicated region
    $region18: #{tpu_custom_call.1} parent=1 // pred_check
      _
    $region19: #{tpu_custom_call.1} parent=1 // pred_check_branch
      %61 = sbr.rel (0) target = $region21
    $region20: #{tpu_custom_call.1} parent=1 // pred_region
      _
    $region21: #{tpu_custom_call.1} parent=1 // pred_fallthru
      _
    // Predicated region
    $region22: #{tpu_custom_call.1} parent=1 // pred_check
      _
    $region23: #{tpu_custom_call.1} parent=1 // pred_check_branch
      %63 = sbr.rel (0) target = $region25
    $region24: #{tpu_custom_call.1} parent=1 // pred_region
      _
    $region25: #{tpu_custom_call.1} parent=1 // pred_fallthru
      _
    // Predicated region
    $region26: #{tpu_custom_call.1} parent=1 // pred_check
      _
    $region27: #{tpu_custom_call.1} parent=1 // pred_check_branch
      %65 = sbr.rel (0) target = $region29
    $region28: #{tpu_custom_call.1} parent=1 // pred_region
      %s67 = ssub.s32 6144, 6144
      %68 = vsyncadd [#allocation10], %s67
      %s69 = sshll.u32 [#allocation9], 4
      %s70 = int_to_ptr.vmem [resolvable:$true] %s69
      %75 = dma.hbm_to_vmem [thread:$0]  %s6, 6144, %s70, [#allocation10], 64, 64, 4
    $region29: #{tpu_custom_call.1} parent=1 // pred_fallthru
      _
    // Predicated region
    $region30: #{tpu_custom_call.1} parent=1 // pred_check
      _
    $region31: #{tpu_custom_call.1} parent=1 // pred_check_branch
      %77 = sbr.rel (0) target = $region33
    $region32: #{tpu_custom_call.1} parent=1 // pred_region
      _
    $region33: #{tpu_custom_call.1} parent=1 // pred_fallthru
      _
    // Predicated region
    $region34: #{tpu_custom_call.1} parent=1 // pred_check
      _
    $region35: #{tpu_custom_call.1} parent=1 // pred_check_branch
      %79 = sbr.rel (0) target = $region37
    $region36: #{tpu_custom_call.1} parent=1 // pred_region
      %s81 = ssub.s32 3072, 3072
      %82 = vsyncadd [#allocation10], %s81
      %s83 = sshll.u32 [#allocation11], 4
      %s84 = int_to_ptr.vmem [resolvable:$true] %s83
      %89 = dma.hbm_to_vmem [thread:$0]  %s8, 3072, %s84, [#allocation10], 64, 64, 4
    $region37: #{tpu_custom_call.1} parent=1 // pred_fallthru
      _
    // Predicated region
    $region38: #{tpu_custom_call.1} parent=1 // pred_check
      _
    $region39: #{tpu_custom_call.1} parent=1 // pred_check_branch
      %91 = sbr.rel (0) target = $region41
    $region40: #{tpu_custom_call.1} parent=1 // pred_region
      _
    $region41: #{tpu_custom_call.1} parent=1 // pred_fallthru
      _
    // Predicated region
    $region42: #{tpu_custom_call.1} parent=1 // pred_check
      _
    $region43: #{tpu_custom_call.1} parent=1 // pred_check_branch
      %93 = sbr.rel (0) target = $region45
    $region44: #{tpu_custom_call.1} parent=1 // pred_region
      %s95 = ssub.s32 3072, 3072
      %96 = vsyncadd [#allocation13], %s95
      %s97 = sshll.u32 [#allocation12], 4
      %s98 = int_to_ptr.vmem [resolvable:$true] %s97
      %103 = dma.hbm_to_vmem [thread:$0]  %s10, 3072, %s98, [#allocation13], 64, 64, 4
    $region45: #{tpu_custom_call.1} parent=1 // pred_fallthru
      _
    // Predicated region
    $region46: #{tpu_custom_call.1} parent=1 // pred_check
      _
    $region47: #{tpu_custom_call.1} parent=1 // pred_check_branch
      %105 = sbr.rel (0) target = $region49
    $region48: #{tpu_custom_call.1} parent=1 // pred_region
      _
    $region49: #{tpu_custom_call.1} parent=1 // pred_fallthru
      _
    // Predicated region
    $region50: #{tpu_custom_call.1} parent=1 // pred_check
      _
    $region51: #{tpu_custom_call.1} parent=1 // pred_check_branch
      %107 = sbr.rel (0) target = $region53
    $region52: #{tpu_custom_call.1} parent=1 // pred_region
      %108 = dma.done [#allocation4], 256
    $region53: #{tpu_custom_call.1} parent=1 // pred_fallthru
      _
    // Predicated region
    $region54: #{tpu_custom_call.1} parent=1 // pred_check
      _
    $region55: #{tpu_custom_call.1} parent=1 // pred_check_branch
      %110 = sbr.rel (0) target = $region57
    $region56: #{tpu_custom_call.1} parent=1 // pred_region
      %111 = dma.done [#allocation7], 2048
    $region57: #{tpu_custom_call.1} parent=1 // pred_fallthru
      _
    // Predicated region
    $region58: #{tpu_custom_call.1} parent=1 // pred_check
      _
    $region59: #{tpu_custom_call.1} parent=1 // pred_check_branch
      %113 = sbr.rel (0) target = $region61
    $region60: #{tpu_custom_call.1} parent=1 // pred_region
      %114 = dma.done [#allocation7], 2048
    $region61: #{tpu_custom_call.1} parent=1 // pred_fallthru
      _
    // Predicated region
    $region62: #{tpu_custom_call.1} parent=1 // pred_check
      _
    $region63: #{tpu_custom_call.1} parent=1 // pred_check_branch
      %116 = sbr.rel (0) target = $region65
    $region64: #{tpu_custom_call.1} parent=1 // pred_region
      %117 = dma.done [#allocation10], 6144
    $region65: #{tpu_custom_call.1} parent=1 // pred_fallthru
      _
    // Predicated region
    $region66: #{tpu_custom_call.1} parent=1 // pred_check
      _
    $region67: #{tpu_custom_call.1} parent=1 // pred_check_branch
      %119 = sbr.rel (0) target = $region69
    $region68: #{tpu_custom_call.1} parent=1 // pred_region
      %120 = dma.done [#allocation10], 3072
    $region69: #{tpu_custom_call.1} parent=1 // pred_fallthru
      _
    // Predicated region
    $region70: #{tpu_custom_call.1} parent=1 // pred_check
      _
    $region71: #{tpu_custom_call.1} parent=1 // pred_check_branch
      %122 = sbr.rel (0) target = $region73
    $region72: #{tpu_custom_call.1} parent=1 // pred_region
      %123 = dma.done [#allocation13], 3072
    $region73: #{tpu_custom_call.1} parent=1 // pred_fallthru
      _
    %p125 = scmp.eq.s32.totalorder 0, 0
    // Predicated region
    $region74: #{tpu_custom_call.1} parent=1 // pred_check
      %p126 = pneg %p125
    $region75: #{tpu_custom_call.1} parent=1 // pred_check_branch
      %128 = sbr.rel (%p126) target = $region77
    $region76: #{tpu_custom_call.1} parent=1 // pred_region
      %129 = vst [vmem:[#allocation2] sm:$0xff] 0.0
      %130 = vst [vmem:[#allocation2 + $0x8] sm:$0xff] 0.0
      %131 = vst [vmem:[#allocation2 + $0x10] sm:$0xff] 0.0
      %132 = vst [vmem:[#allocation2 + $0x18] sm:$0xff] 0.0
    $region77: #{tpu_custom_call.1} parent=1 // pred_fallthru
      _
    %v133 = vld [vmem:[#allocation2] sm:$0xff]
    %v134 = vld [vmem:[#allocation2 + $0x10] sm:$0xff]
    %v135 = vld [vmem:[#allocation3] sm:$0xff]
    %v136 = vld [vmem:[#allocation3 + $0x8] sm:$0xff]
    %v137 = vld [vmem:[#allocation8] sm:$0xf]
    %v138 = vld [vmem:[#allocation8 + $0x4] sm:$0xf]
    %v139 = vld [vmem:[#allocation8 + $0x8] sm:$0xf]
    %v140 = vld [vmem:[#allocation8 + $0xc] sm:$0xf]
    %v141 = vld [vmem:[#allocation8 + $0x10] sm:$0xf]
    %v142 = vld [vmem:[#allocation8 + $0x14] sm:$0xf]
    %v143 = vld [vmem:[#allocation8 + $0x18] sm:$0xf]
    %v144 = vld [vmem:[#allocation8 + $0x1c] sm:$0xf]
    %v145 = vld [vmem:[#allocation8 + $0x20] sm:$0xf]
    %v146 = vld [vmem:[#allocation8 + $0x24] sm:$0xf]
    %v147 = vld [vmem:[#allocation8 + $0x28] sm:$0xf]
    %v148 = vld [vmem:[#allocation8 + $0x2c] sm:$0xf]
    %v149 = vld [vmem:[#allocation8 + $0x30] sm:$0xf]
    %v150 = vld [vmem:[#allocation8 + $0x34] sm:$0xf]
    %v151 = vld [vmem:[#allocation8 + $0x38] sm:$0xf]
    %v152 = vld [vmem:[#allocation8 + $0x3c] sm:$0xf]
    %v153 = vld [vmem:[#allocation8 + $0x40] sm:$0xf]
    %v154 = vld [vmem:[#allocation8 + $0x44] sm:$0xf]
    %v155 = vld [vmem:[#allocation8 + $0x48] sm:$0xf]
    %v156 = vld [vmem:[#allocation8 + $0x4c] sm:$0xf]
    %v157 = vld [vmem:[#allocation8 + $0x50] sm:$0xf]
    %v158 = vld [vmem:[#allocation8 + $0x54] sm:$0xf]
    %v159 = vld [vmem:[#allocation8 + $0x58] sm:$0xf]
    %v160 = vld [vmem:[#allocation8 + $0x5c] sm:$0xf]
    %v161 = vld [vmem:[#allocation8 + $0x60] sm:$0xf]
    %v162 = vld [vmem:[#allocation8 + $0x64] sm:$0xf]
    %v163 = vld [vmem:[#allocation8 + $0x68] sm:$0xf]
    %v164 = vld [vmem:[#allocation8 + $0x6c] sm:$0xf]
    %v165 = vld [vmem:[#allocation8 + $0x70] sm:$0xf]
    %v166 = vld [vmem:[#allocation8 + $0x74] sm:$0xf]
    %v167 = vld [vmem:[#allocation8 + $0x78] sm:$0xf]
    %v168 = vld [vmem:[#allocation8 + $0x7c] sm:$0xf]
    %v171 = vunpack.c.l.b16 %v135
    %v172 = vunpack.c.h.b16 %v135
    %v173 = vunpack.c.l.b16 %v136
    %v174 = vunpack.c.h.b16 %v136
    %v175 = vpack.c.b16 %v173, %v171
    %v176 = vpack.c.b16 %v174, %v172
    %v211 = vunpack.c.l.b16 %v137
    %v212 = vunpack.c.l.b16 %v138
    %v213 = vunpack.c.l.b16 %v139
    %v214 = vunpack.c.l.b16 %v140
    %v215 = vunpack.c.l.b16 %v141
    %v216 = vunpack.c.l.b16 %v142
    %v217 = vunpack.c.l.b16 %v143
    %v218 = vunpack.c.l.b16 %v144
    %v219 = vunpack.c.l.b16 %v145
    %v220 = vunpack.c.l.b16 %v146
    %v221 = vunpack.c.l.b16 %v147
    %v222 = vunpack.c.l.b16 %v148
    %v223 = vunpack.c.l.b16 %v149
    %v224 = vunpack.c.l.b16 %v150
    %v225 = vunpack.c.l.b16 %v151
    %v226 = vunpack.c.l.b16 %v152
    %v227 = vunpack.c.l.b16 %v153
    %v228 = vunpack.c.l.b16 %v154
    %v229 = vunpack.c.l.b16 %v155
    %v230 = vunpack.c.l.b16 %v156
    %v231 = vunpack.c.l.b16 %v157
    %v232 = vunpack.c.l.b16 %v158
    %v233 = vunpack.c.l.b16 %v159
    %v234 = vunpack.c.l.b16 %v160
    %v235 = vunpack.c.l.b16 %v161
    %v236 = vunpack.c.l.b16 %v162
    %v237 = vunpack.c.l.b16 %v163
    %v238 = vunpack.c.l.b16 %v164
    %v239 = vunpack.c.l.b16 %v165
    %v240 = vunpack.c.l.b16 %v166
    %v241 = vunpack.c.l.b16 %v167
    %v242 = vunpack.c.l.b16 %v168
    %v243 = vpack.c.b16 %v212, %v211
    %v244 = vpack.c.b16 %v214, %v213
    %v245 = vpack.c.b16 %v216, %v215
    %v246 = vpack.c.b16 %v218, %v217
    %v247 = vpack.c.b16 %v220, %v219
    %v248 = vpack.c.b16 %v222, %v221
    %v249 = vpack.c.b16 %v224, %v223
    %v250 = vpack.c.b16 %v226, %v225
    %v251 = vpack.c.b16 %v228, %v227
    %v252 = vpack.c.b16 %v230, %v229
    %v253 = vpack.c.b16 %v232, %v231
    %v254 = vpack.c.b16 %v234, %v233
    %v255 = vpack.c.b16 %v236, %v235
    %v256 = vpack.c.b16 %v238, %v237
    %v257 = vpack.c.b16 %v240, %v239
    %v258 = vpack.c.b16 %v242, %v241
    %275 = vmatprep.subr.bf16.mxu0 0
    %276 = vmatpush1.bf16.msra.mxu0 %v243
    %277 = vmatprep.subr.bf16.mxu0 0
    %278 = vmatpush1.bf16.msra.mxu0 %v244
    %279 = vmatprep.subr.bf16.mxu0 0
    %280 = vmatpush1.bf16.msra.mxu0 %v245
    %281 = vmatprep.subr.bf16.mxu0 0
    %282 = vmatpush1.bf16.msra.mxu0 %v246
    %283 = vmatprep.subr.bf16.mxu0 0
    %284 = vmatpush1.bf16.msra.mxu0 %v247
    %285 = vmatprep.subr.bf16.mxu0 0
    %286 = vmatpush1.bf16.msra.mxu0 %v248
    %287 = vmatprep.subr.bf16.mxu0 0
    %288 = vmatpush1.bf16.msra.mxu0 %v249
    %289 = vmatprep.subr.bf16.mxu0 0
    %290 = vmatpush1.bf16.msra.mxu0 %v250
    %291 = vmatprep.subr.bf16.mxu0 0
    %292 = vmatpush1.bf16.msra.mxu0 %v251
    %293 = vmatprep.subr.bf16.mxu0 0
    %294 = vmatpush1.bf16.msra.mxu0 %v252
    %295 = vmatprep.subr.bf16.mxu0 0
    %296 = vmatpush1.bf16.msra.mxu0 %v253
    %297 = vmatprep.subr.bf16.mxu0 0
    %298 = vmatpush1.bf16.msra.mxu0 %v254
    %299 = vmatprep.subr.bf16.mxu0 0
    %300 = vmatpush1.bf16.msra.mxu0 %v255
    %301 = vmatprep.subr.bf16.mxu0 0
    %302 = vmatpush1.bf16.msra.mxu0 %v256
    %303 = vmatprep.subr.bf16.mxu0 0
    %304 = vmatpush1.bf16.msra.mxu0 %v257
    %305 = vmatprep.subr.bf16.mxu0 0
    %306 = vmatpush1.bf16.msra.mxu0 %v258
    %307 = vmatprep.mubr.bf16.mxu0 %v176
    %308 = vmatmul.mubr.bf16.gmra.mrb[0].mxu0 %v175
    %v309 = vpop.f32.mrb[0].mxu0
    %v310 = vadd.f32 0.0, %v309
    %v311 = vpop.f32.mrb[0].mxu0
    %v312 = vpop.f32.mrb[0].mxu0
    %v313 = vadd.f32 0.0, %v312
    %v314 = vpop.f32.mrb[0].mxu0
    %315 = vdwg.mxu0
    %v316 = vadd.f32 %v133, %v310
    %v317 = vadd.f32 %v134, %v313
    %318 = vst [vmem:[#allocation2] sm:$0xff] %v316
    %319 = vst [vmem:[#allocation2 + $0x10] sm:$0xff] %v317
    %v320 = vld [vmem:[#allocation2 + $0x8] sm:$0xff]
    %v321 = vld [vmem:[#allocation2 + $0x18] sm:$0xff]
    %v322 = vld [vmem:[%s0] sm:$0xff]
    %v323 = vld [vmem:[%s0 + $0x8] sm:$0xff]
    %v324 = vld [vmem:[#allocation6] sm:$0xf]
    %v325 = vld [vmem:[#allocation6 + $0x4] sm:$0xf]
    %v326 = vld [vmem:[#allocation6 + $0x8] sm:$0xf]
    %v327 = vld [vmem:[#allocation6 + $0xc] sm:$0xf]
    %v328 = vld [vmem:[#allocation6 + $0x10] sm:$0xf]
    %v329 = vld [vmem:[#allocation6 + $0x14] sm:$0xf]
    %v330 = vld [vmem:[#allocation6 + $0x18] sm:$0xf]
    %v331 = vld [vmem:[#allocation6 + $0x1c] sm:$0xf]
    %v332 = vld [vmem:[#allocation6 + $0x20] sm:$0xf]
    %v333 = vld [vmem:[#allocation6 + $0x24] sm:$0xf]
    %v334 = vld [vmem:[#allocation6 + $0x28] sm:$0xf]
    %v335 = vld [vmem:[#allocation6 + $0x2c] sm:$0xf]
    %v336 = vld [vmem:[#allocation6 + $0x30] sm:$0xf]
    %v337 = vld [vmem:[#allocation6 + $0x34] sm:$0xf]
    %v338 = vld [vmem:[#allocation6 + $0x38] sm:$0xf]
    %v339 = vld [vmem:[#allocation6 + $0x3c] sm:$0xf]
    %v340 = vld [vmem:[#allocation6 + $0x40] sm:$0xf]
    %v341 = vld [vmem:[#allocation6 + $0x44] sm:$0xf]
    %v342 = vld [vmem:[#allocation6 + $0x48] sm:$0xf]
    %v343 = vld [vmem:[#allocation6 + $0x4c] sm:$0xf]
    %v344 = vld [vmem:[#allocation6 + $0x50] sm:$0xf]
    %v345 = vld [vmem:[#allocation6 + $0x54] sm:$0xf]
    %v346 = vld [vmem:[#allocation6 + $0x58] sm:$0xf]
    %v347 = vld [vmem:[#allocation6 + $0x5c] sm:$0xf]
    %v348 = vld [vmem:[#allocation6 + $0x60] sm:$0xf]
    %v349 = vld [vmem:[#allocation6 + $0x64] sm:$0xf]
    %v350 = vld [vmem:[#allocation6 + $0x68] sm:$0xf]
    %v351 = vld [vmem:[#allocation6 + $0x6c] sm:$0xf]
    %v352 = vld [vmem:[#allocation6 + $0x70] sm:$0xf]
    %v353 = vld [vmem:[#allocation6 + $0x74] sm:$0xf]
    %v354 = vld [vmem:[#allocation6 + $0x78] sm:$0xf]
    %v355 = vld [vmem:[#allocation6 + $0x7c] sm:$0xf]
    %v358 = vunpack.c.l.b16 %v322
    %v359 = vunpack.c.h.b16 %v322
    %v360 = vunpack.c.l.b16 %v323
    %v361 = vunpack.c.h.b16 %v323
    %v362 = vpack.c.b16 %v360, %v358
    %v363 = vpack.c.b16 %v361, %v359
    %v398 = vunpack.c.l.b16 %v324
    %v399 = vunpack.c.l.b16 %v325
    %v400 = vunpack.c.l.b16 %v326
    %v401 = vunpack.c.l.b16 %v327
    %v402 = vunpack.c.l.b16 %v328
    %v403 = vunpack.c.l.b16 %v329
    %v404 = vunpack.c.l.b16 %v330
    %v405 = vunpack.c.l.b16 %v331
    %v406 = vunpack.c.l.b16 %v332
    %v407 = vunpack.c.l.b16 %v333
    %v408 = vunpack.c.l.b16 %v334
    %v409 = vunpack.c.l.b16 %v335
    %v410 = vunpack.c.l.b16 %v336
    %v411 = vunpack.c.l.b16 %v337
    %v412 = vunpack.c.l.b16 %v338
    %v413 = vunpack.c.l.b16 %v339
    %v414 = vunpack.c.l.b16 %v340
    %v415 = vunpack.c.l.b16 %v341
    %v416 = vunpack.c.l.b16 %v342
    %v417 = vunpack.c.l.b16 %v343
    %v418 = vunpack.c.l.b16 %v344
    %v419 = vunpack.c.l.b16 %v345
    %v420 = vunpack.c.l.b16 %v346
    %v421 = vunpack.c.l.b16 %v347
    %v422 = vunpack.c.l.b16 %v348
    %v423 = vunpack.c.l.b16 %v349
    %v424 = vunpack.c.l.b16 %v350
    %v425 = vunpack.c.l.b16 %v351
    %v426 = vunpack.c.l.b16 %v352
    %v427 = vunpack.c.l.b16 %v353
    %v428 = vunpack.c.l.b16 %v354
    %v429 = vunpack.c.l.b16 %v355
    %v430 = vpack.c.b16 %v399, %v398
    %v431 = vpack.c.b16 %v401, %v400
    %v432 = vpack.c.b16 %v403, %v402
    %v433 = vpack.c.b16 %v405, %v404
    %v434 = vpack.c.b16 %v407, %v406
    %v435 = vpack.c.b16 %v409, %v408
    %v436 = vpack.c.b16 %v411, %v410
    %v437 = vpack.c.b16 %v413, %v412
    %v438 = vpack.c.b16 %v415, %v414
    %v439 = vpack.c.b16 %v417, %v416
    %v440 = vpack.c.b16 %v419, %v418
    %v441 = vpack.c.b16 %v421, %v420
    %v442 = vpack.c.b16 %v423, %v422
    %v443 = vpack.c.b16 %v425, %v424
    %v444 = vpack.c.b16 %v427, %v426
    %v445 = vpack.c.b16 %v429, %v428
    %462 = vmatprep.subr.bf16.mxu0 0
    %463 = vmatpush1.bf16.msra.mxu0 %v430
    %464 = vmatprep.subr.bf16.mxu0 0
    %465 = vmatpush1.bf16.msra.mxu0 %v431
    %466 = vmatprep.subr.bf16.mxu0 0
    %467 = vmatpush1.bf16.msra.mxu0 %v432
    %468 = vmatprep.subr.bf16.mxu0 0
    %469 = vmatpush1.bf16.msra.mxu0 %v433
    %470 = vmatprep.subr.bf16.mxu0 0
    %471 = vmatpush1.bf16.msra.mxu0 %v434
    %472 = vmatprep.subr.bf16.mxu0 0
    %473 = vmatpush1.bf16.msra.mxu0 %v435
    %474 = vmatprep.subr.bf16.mxu0 0
    %475 = vmatpush1.bf16.msra.mxu0 %v436
    %476 = vmatprep.subr.bf16.mxu0 0
    %477 = vmatpush1.bf16.msra.mxu0 %v437
    %478 = vmatprep.subr.bf16.mxu0 0
    %479 = vmatpush1.bf16.msra.mxu0 %v438
    %480 = vmatprep.subr.bf16.mxu0 0
    %481 = vmatpush1.bf16.msra.mxu0 %v439
    %482 = vmatprep.subr.bf16.mxu0 0
    %483 = vmatpush1.bf16.msra.mxu0 %v440
    %484 = vmatprep.subr.bf16.mxu0 0
    %485 = vmatpush1.bf16.msra.mxu0 %v441
    %486 = vmatprep.subr.bf16.mxu0 0
    %487 = vmatpush1.bf16.msra.mxu0 %v442
    %488 = vmatprep.subr.bf16.mxu0 0
    %489 = vmatpush1.bf16.msra.mxu0 %v443
    %490 = vmatprep.subr.bf16.mxu0 0
    %491 = vmatpush1.bf16.msra.mxu0 %v444
    %492 = vmatprep.subr.bf16.mxu0 0
    %493 = vmatpush1.bf16.msra.mxu0 %v445
    %494 = vmatprep.mubr.bf16.mxu0 %v363
    %495 = vmatmul.mubr.bf16.gmra.mrb[0].mxu0 %v362
    %v496 = vpop.f32.mrb[0].mxu0
    %v497 = vadd.f32 0.0, %v496
    %v498 = vpop.f32.mrb[0].mxu0
    %v499 = vpop.f32.mrb[0].mxu0
    %v500 = vadd.f32 0.0, %v499
    %v501 = vpop.f32.mrb[0].mxu0
    %502 = vdwg.mxu0
    %v503 = vadd.f32 %v320, %v497
    %v504 = vadd.f32 %v321, %v500
    %505 = vst [vmem:[#allocation2 + $0x8] sm:$0xff] %v503
    %506 = vst [vmem:[#allocation2 + $0x18] sm:$0xff] %v504
    // Predicated region
    $region78: #{tpu_custom_call.1} parent=1 // pred_check
      %p507 = pneg %p125
    $region79: #{tpu_custom_call.1} parent=1 // pred_check_branch
      %509 = sbr.rel (%p507) target = $region81
    $region80: #{tpu_custom_call.1} parent=1 // pred_region
      %v510 = vld [vmem:[#allocation2] sm:$0xff]
      %v511 = vld [vmem:[#allocation2 + $0x8] sm:$0xff]
      %v512 = vld [vmem:[#allocation2 + $0x10] sm:$0xff]
      %v513 = vld [vmem:[#allocation2 + $0x18] sm:$0xff]
      %v514 = vld [vmem:[%s4] sm:$0x3]
      %v516 = vlaneseq
      %v517 = vshrl.u32 %v516, 7
      %v518 = vsub.s32 0, %v517
      %v519 = vrot.slane %v514, %v518
      %v520 = vlaneseq
      %v521 = vshrl.u32 %v520, 7
      %v522 = vsub.s32 1, %v521
      %v523 = vrot.slane %v514, %v522
      %v526 = vadd.f32 %v510, %v519
      %v527 = vadd.f32 %v511, %v523
      %v528 = vadd.f32 %v512, %v519
      %v529 = vadd.f32 %v513, %v523
      %v530 = vpack.c.bf16 %v528, %v526
      %v531 = vpack.c.bf16 %v529, %v527
      %v532 = vld [vmem:[%s5] sm:$0xff]
      %v533 = vld [vmem:[%s5 + $0x8] sm:$0xff]
      %v534 = vld [vmem:[%s7] sm:$0x7]
      %v535 = vld [vmem:[%s9] sm:$0x7]
      %v536 = vld [vmem:[%s11] sm:$0x7]
      %vm537 = vcmp.eq.s32.totalorder %v532, 0
      %vm538 = vcmp.eq.s32.totalorder %v533, 0
      %v539 = vld [vmem:[#allocation9] sm:$0xf]
      %v540 = vld [vmem:[#allocation9 + $0x4] sm:$0xf]
      %v541 = vld [vmem:[#allocation9 + $0x8] sm:$0xf]
      %v542 = vld [vmem:[#allocation9 + $0xc] sm:$0xf]
      %v543 = vld [vmem:[#allocation9 + $0x10] sm:$0xf]
      %v544 = vld [vmem:[#allocation9 + $0x14] sm:$0xf]
      %v545 = vld [vmem:[#allocation9 + $0x18] sm:$0xf]
      %v546 = vld [vmem:[#allocation9 + $0x1c] sm:$0xf]
      %v547 = vld [vmem:[#allocation9 + $0x20] sm:$0xf]
      %v548 = vld [vmem:[#allocation9 + $0x24] sm:$0xf]
      %v549 = vld [vmem:[#allocation9 + $0x28] sm:$0xf]
      %v550 = vld [vmem:[#allocation9 + $0x2c] sm:$0xf]
      %v551 = vld [vmem:[#allocation9 + $0x30] sm:$0xf]
      %v552 = vld [vmem:[#allocation9 + $0x34] sm:$0xf]
      %v553 = vld [vmem:[#allocation9 + $0x38] sm:$0xf]
      %v554 = vld [vmem:[#allocation9 + $0x3c] sm:$0xf]
      %v555 = vld [vmem:[#allocation9 + $0x40] sm:$0xf]
      %v556 = vld [vmem:[#allocation9 + $0x44] sm:$0xf]
      %v557 = vld [vmem:[#allocation9 + $0x48] sm:$0xf]
      %v558 = vld [vmem:[#allocation9 + $0x4c] sm:$0xf]
      %v559 = vld [vmem:[#allocation9 + $0x50] sm:$0xf]
      %v560 = vld [vmem:[#allocation9 + $0x54] sm:$0xf]
      %v561 = vld [vmem:[#allocation9 + $0x58] sm:$0xf]
      %v562 = vld [vmem:[#allocation9 + $0x5c] sm:$0xf]
      %v563 = vld [vmem:[#allocation9 + $0x60] sm:$0xf]
      %v564 = vld [vmem:[#allocation9 + $0x64] sm:$0xf]
      %v565 = vld [vmem:[#allocation9 + $0x68] sm:$0xf]
      %v566 = vld [vmem:[#allocation9 + $0x6c] sm:$0xf]
      %v567 = vld [vmem:[#allocation9 + $0x70] sm:$0xf]
      %v568 = vld [vmem:[#allocation9 + $0x74] sm:$0xf]
      %v569 = vld [vmem:[#allocation9 + $0x78] sm:$0xf]
      %v570 = vld [vmem:[#allocation9 + $0x7c] sm:$0xf]
      %v571 = vlaneseq
      %v572 = vshrl.u32 %v571, 7
      %v573 = vsub.s32 0, %v572
      %v574 = vrot.slane %v534, %v573
      %v607 = vunpack.c.l.b16 %v539
      %v608 = vunpack.c.l.b16 %v540
      %v609 = vunpack.c.l.b16 %v541
      %v610 = vunpack.c.l.b16 %v542
      %v611 = vunpack.c.l.b16 %v543
      %v612 = vunpack.c.l.b16 %v544
      %v613 = vunpack.c.l.b16 %v545
      %v614 = vunpack.c.l.b16 %v546
      %v615 = vunpack.c.l.b16 %v547
      %v616 = vunpack.c.l.b16 %v548
      %v617 = vunpack.c.l.b16 %v549
      %v618 = vunpack.c.l.b16 %v550
      %v619 = vunpack.c.l.b16 %v551
      %v620 = vunpack.c.l.b16 %v552
      %v621 = vunpack.c.l.b16 %v553
      %v622 = vunpack.c.l.b16 %v554
      %v623 = vunpack.c.l.b16 %v555
      %v624 = vunpack.c.l.b16 %v556
      %v625 = vunpack.c.l.b16 %v557
      %v626 = vunpack.c.l.b16 %v558
      %v627 = vunpack.c.l.b16 %v559
      %v628 = vunpack.c.l.b16 %v560
      %v629 = vunpack.c.l.b16 %v561
      %v630 = vunpack.c.l.b16 %v562
      %v631 = vunpack.c.l.b16 %v563
      %v632 = vunpack.c.l.b16 %v564
      %v633 = vunpack.c.l.b16 %v565
      %v634 = vunpack.c.l.b16 %v566
      %v635 = vunpack.c.l.b16 %v567
      %v636 = vunpack.c.l.b16 %v568
      %v637 = vunpack.c.l.b16 %v569
      %v638 = vunpack.c.l.b16 %v570
      %v639 = vpack.c.b16 %v608, %v607
      %v640 = vpack.c.b16 %v610, %v609
      %v641 = vpack.c.b16 %v612, %v611
      %v642 = vpack.c.b16 %v614, %v613
      %v643 = vpack.c.b16 %v616, %v615
      %v644 = vpack.c.b16 %v618, %v617
      %v645 = vpack.c.b16 %v620, %v619
      %v646 = vpack.c.b16 %v622, %v621
      %v647 = vpack.c.b16 %v624, %v623
      %v648 = vpack.c.b16 %v626, %v625
      %v649 = vpack.c.b16 %v628, %v627
      %v650 = vpack.c.b16 %v630, %v629
      %v651 = vpack.c.b16 %v632, %v631
      %v652 = vpack.c.b16 %v634, %v633
      %v653 = vpack.c.b16 %v636, %v635
      %v654 = vpack.c.b16 %v638, %v637
      %671 = vmatprep.subr.bf16.mxu0 0
      %672 = vmatpush1.bf16.msra.mxu0 %v639
      %673 = vmatprep.subr.bf16.mxu0 0
      %674 = vmatpush1.bf16.msra.mxu0 %v640
      %675 = vmatprep.subr.bf16.mxu0 0
      %676 = vmatpush1.bf16.msra.mxu0 %v641
      %677 = vmatprep.subr.bf16.mxu0 0
      %678 = vmatpush1.bf16.msra.mxu0 %v642
      %679 = vmatprep.subr.bf16.mxu0 0
      %680 = vmatpush1.bf16.msra.mxu0 %v643
      %681 = vmatprep.subr.bf16.mxu0 0
      %682 = vmatpush1.bf16.msra.mxu0 %v644
      %683 = vmatprep.subr.bf16.mxu0 0
      %684 = vmatpush1.bf16.msra.mxu0 %v645
      %685 = vmatprep.subr.bf16.mxu0 0
      %686 = vmatpush1.bf16.msra.mxu0 %v646
      %687 = vmatprep.subr.bf16.mxu0 0
      %688 = vmatpush1.bf16.msra.mxu0 %v647
      %689 = vmatprep.subr.bf16.mxu0 0
      %690 = vmatpush1.bf16.msra.mxu0 %v648
      %691 = vmatprep.subr.bf16.mxu0 0
      %692 = vmatpush1.bf16.msra.mxu0 %v649
      %693 = vmatprep.subr.bf16.mxu0 0
      %694 = vmatpush1.bf16.msra.mxu0 %v650
      %695 = vmatprep.subr.bf16.mxu0 0
      %696 = vmatpush1.bf16.msra.mxu0 %v651
      %697 = vmatprep.subr.bf16.mxu0 0
      %698 = vmatpush1.bf16.msra.mxu0 %v652
      %699 = vmatprep.subr.bf16.mxu0 0
      %700 = vmatpush1.bf16.msra.mxu0 %v653
      %701 = vmatprep.subr.bf16.mxu0 0
      %702 = vmatpush1.bf16.msra.mxu0 %v654
      %703 = vmatprep.mubr.bf16.mxu0 %v531
      %704 = vmatmul.mubr.bf16.gmra.mrb[0].mxu0 %v530
      %v705 = vpop.f32.mrb[0].mxu0
      %v706 = vadd.f32 %v574, %v705
      %v707 = vpop.f32.mrb[0].mxu0
      %v708 = vpop.f32.mrb[0].mxu0
      %v709 = vadd.f32 %v574, %v708
      %v710 = vpop.f32.mrb[0].mxu0
      %711 = vdwg.mxu0
      %v712 = vsel %vm537, 1, 0
      %v713 = vsel %vm538, 1, 0
      %714 = vset.pattern.permute.xlu0 0
      %715 = vperm.xlu0 %714, %v712
      %v716 = vpop.permute.xlu0 %715
      %717 = vset.pattern.permute.xlu0 0
      %718 = vperm.xlu0 %717, %v713
      %v719 = vpop.permute.xlu0 %718
      %vm720 = vcmp.eq.s32.totalorder %v716, 1
      %vm721 = vcmp.eq.s32.totalorder %v719, 1
      %v722 = vsel %vm720, %v706, 0.0
      %v723 = vsel %vm721, %v709, 0.0
      %vm724 = vcmp.eq.s32.totalorder %v532, 1
      %vm725 = vcmp.eq.s32.totalorder %v533, 1
      %s726 = scalar_lea.vmem [#allocation9], 128
      %v727 = vld [vmem:[%s726] sm:$0xf]
      %v728 = vld [vmem:[%s726 + $0x4] sm:$0xf]
      %v729 = vld [vmem:[%s726 + $0x8] sm:$0xf]
      %v730 = vld [vmem:[%s726 + $0xc] sm:$0xf]
      %v731 = vld [vmem:[%s726 + $0x10] sm:$0xf]
      %v732 = vld [vmem:[%s726 + $0x14] sm:$0xf]
      %v733 = vld [vmem:[%s726 + $0x18] sm:$0xf]
      %v734 = vld [vmem:[%s726 + $0x1c] sm:$0xf]
      %v735 = vld [vmem:[%s726 + $0x20] sm:$0xf]
      %v736 = vld [vmem:[%s726 + $0x24] sm:$0xf]
      %v737 = vld [vmem:[%s726 + $0x28] sm:$0xf]
      %v738 = vld [vmem:[%s726 + $0x2c] sm:$0xf]
      %v739 = vld [vmem:[%s726 + $0x30] sm:$0xf]
      %v740 = vld [vmem:[%s726 + $0x34] sm:$0xf]
      %v741 = vld [vmem:[%s726 + $0x38] sm:$0xf]
      %v742 = vld [vmem:[%s726 + $0x3c] sm:$0xf]
      %v743 = vld [vmem:[%s726 + $0x40] sm:$0xf]
      %v744 = vld [vmem:[%s726 + $0x44] sm:$0xf]
      %v745 = vld [vmem:[%s726 + $0x48] sm:$0xf]
      %v746 = vld [vmem:[%s726 + $0x4c] sm:$0xf]
      %v747 = vld [vmem:[%s726 + $0x50] sm:$0xf]
      %v748 = vld [vmem:[%s726 + $0x54] sm:$0xf]
      %v749 = vld [vmem:[%s726 + $0x58] sm:$0xf]
      %v750 = vld [vmem:[%s726 + $0x5c] sm:$0xf]
      %v751 = vld [vmem:[%s726 + $0x60] sm:$0xf]
      %v752 = vld [vmem:[%s726 + $0x64] sm:$0xf]
      %v753 = vld [vmem:[%s726 + $0x68] sm:$0xf]
      %v754 = vld [vmem:[%s726 + $0x6c] sm:$0xf]
      %v755 = vld [vmem:[%s726 + $0x70] sm:$0xf]
      %v756 = vld [vmem:[%s726 + $0x74] sm:$0xf]
      %v757 = vld [vmem:[%s726 + $0x78] sm:$0xf]
      %v758 = vld [vmem:[%s726 + $0x7c] sm:$0xf]
      %v759 = vlaneseq
      %v760 = vshrl.u32 %v759, 7
      %v761 = vsub.s32 1, %v760
      %v762 = vrot.slane %v534, %v761
      %v795 = vunpack.c.l.b16 %v727
      %v796 = vunpack.c.l.b16 %v728
      %v797 = vunpack.c.l.b16 %v729
      %v798 = vunpack.c.l.b16 %v730
      %v799 = vunpack.c.l.b16 %v731
      %v800 = vunpack.c.l.b16 %v732
      %v801 = vunpack.c.l.b16 %v733
      %v802 = vunpack.c.l.b16 %v734
      %v803 = vunpack.c.l.b16 %v735
      %v804 = vunpack.c.l.b16 %v736
      %v805 = vunpack.c.l.b16 %v737
      %v806 = vunpack.c.l.b16 %v738
      %v807 = vunpack.c.l.b16 %v739
      %v808 = vunpack.c.l.b16 %v740
      %v809 = vunpack.c.l.b16 %v741
      %v810 = vunpack.c.l.b16 %v742
      %v811 = vunpack.c.l.b16 %v743
      %v812 = vunpack.c.l.b16 %v744
      %v813 = vunpack.c.l.b16 %v745
      %v814 = vunpack.c.l.b16 %v746
      %v815 = vunpack.c.l.b16 %v747
      %v816 = vunpack.c.l.b16 %v748
      %v817 = vunpack.c.l.b16 %v749
      %v818 = vunpack.c.l.b16 %v750
      %v819 = vunpack.c.l.b16 %v751
      %v820 = vunpack.c.l.b16 %v752
      %v821 = vunpack.c.l.b16 %v753
      %v822 = vunpack.c.l.b16 %v754
      %v823 = vunpack.c.l.b16 %v755
      %v824 = vunpack.c.l.b16 %v756
      %v825 = vunpack.c.l.b16 %v757
      %v826 = vunpack.c.l.b16 %v758
      %v827 = vpack.c.b16 %v796, %v795
      %v828 = vpack.c.b16 %v798, %v797
      %v829 = vpack.c.b16 %v800, %v799
      %v830 = vpack.c.b16 %v802, %v801
      %v831 = vpack.c.b16 %v804, %v803
      %v832 = vpack.c.b16 %v806, %v805
      %v833 = vpack.c.b16 %v808, %v807
      %v834 = vpack.c.b16 %v810, %v809
      %v835 = vpack.c.b16 %v812, %v811
      %v836 = vpack.c.b16 %v814, %v813
      %v837 = vpack.c.b16 %v816, %v815
      %v838 = vpack.c.b16 %v818, %v817
      %v839 = vpack.c.b16 %v820, %v819
      %v840 = vpack.c.b16 %v822, %v821
      %v841 = vpack.c.b16 %v824, %v823
      %v842 = vpack.c.b16 %v826, %v825
      %859 = vmatprep.subr.bf16.mxu0 0
      %860 = vmatpush1.bf16.msra.mxu0 %v827
      %861 = vmatprep.subr.bf16.mxu0 0
      %862 = vmatpush1.bf16.msra.mxu0 %v828
      %863 = vmatprep.subr.bf16.mxu0 0
      %864 = vmatpush1.bf16.msra.mxu0 %v829
      %865 = vmatprep.subr.bf16.mxu0 0
      %866 = vmatpush1.bf16.msra.mxu0 %v830
      %867 = vmatprep.subr.bf16.mxu0 0
      %868 = vmatpush1.bf16.msra.mxu0 %v831
      %869 = vmatprep.subr.bf16.mxu0 0
      %870 = vmatpush1.bf16.msra.mxu0 %v832
      %871 = vmatprep.subr.bf16.mxu0 0
      %872 = vmatpush1.bf16.msra.mxu0 %v833
      %873 = vmatprep.subr.bf16.mxu0 0
      %874 = vmatpush1.bf16.msra.mxu0 %v834
      %875 = vmatprep.subr.bf16.mxu0 0
      %876 = vmatpush1.bf16.msra.mxu0 %v835
      %877 = vmatprep.subr.bf16.mxu0 0
      %878 = vmatpush1.bf16.msra.mxu0 %v836
      %879 = vmatprep.subr.bf16.mxu0 0
      %880 = vmatpush1.bf16.msra.mxu0 %v837
      %881 = vmatprep.subr.bf16.mxu0 0
      %882 = vmatpush1.bf16.msra.mxu0 %v838
      %883 = vmatprep.subr.bf16.mxu0 0
      %884 = vmatpush1.bf16.msra.mxu0 %v839
      %885 = vmatprep.subr.bf16.mxu0 0
      %886 = vmatpush1.bf16.msra.mxu0 %v840
      %887 = vmatprep.subr.bf16.mxu0 0
      %888 = vmatpush1.bf16.msra.mxu0 %v841
      %889 = vmatprep.subr.bf16.mxu0 0
      %890 = vmatpush1.bf16.msra.mxu0 %v842
      %891 = vmatprep.mubr.bf16.mxu0 %v531
      %892 = vmatmul.mubr.bf16.gmra.mrb[0].mxu0 %v530
      %v893 = vpop.f32.mrb[0].mxu0
      %v894 = vadd.f32 %v762, %v893
      %v895 = vpop.f32.mrb[0].mxu0
      %v896 = vpop.f32.mrb[0].mxu0
      %v897 = vadd.f32 %v762, %v896
      %v898 = vpop.f32.mrb[0].mxu0
      %899 = vdwg.mxu0
      %v900 = vsel %vm724, 1, 0
      %v901 = vsel %vm725, 1, 0
      %902 = vset.pattern.permute.xlu0 0
      %903 = vperm.xlu0 %902, %v900
      %v904 = vpop.permute.xlu0 %903
      %905 = vset.pattern.permute.xlu0 0
      %906 = vperm.xlu0 %905, %v901
      %v907 = vpop.permute.xlu0 %906
      %vm908 = vcmp.eq.s32.totalorder %v904, 1
      %vm909 = vcmp.eq.s32.totalorder %v907, 1
      %v910 = vsel %vm908, %v894, %v722
      %v911 = vsel %vm909, %v897, %v723
      %vm912 = vcmp.eq.s32.totalorder %v532, 2
      %vm913 = vcmp.eq.s32.totalorder %v533, 2
      %s914 = scalar_lea.vmem [#allocation9], 256
      %v915 = vld [vmem:[%s914] sm:$0xf]
      %v916 = vld [vmem:[%s914 + $0x4] sm:$0xf]
      %v917 = vld [vmem:[%s914 + $0x8] sm:$0xf]
      %v918 = vld [vmem:[%s914 + $0xc] sm:$0xf]
      %v919 = vld [vmem:[%s914 + $0x10] sm:$0xf]
      %v920 = vld [vmem:[%s914 + $0x14] sm:$0xf]
      %v921 = vld [vmem:[%s914 + $0x18] sm:$0xf]
      %v922 = vld [vmem:[%s914 + $0x1c] sm:$0xf]
      %v923 = vld [vmem:[%s914 + $0x20] sm:$0xf]
      %v924 = vld [vmem:[%s914 + $0x24] sm:$0xf]
      %v925 = vld [vmem:[%s914 + $0x28] sm:$0xf]
      %v926 = vld [vmem:[%s914 + $0x2c] sm:$0xf]
      %v927 = vld [vmem:[%s914 + $0x30] sm:$0xf]
      %v928 = vld [vmem:[%s914 + $0x34] sm:$0xf]
      %v929 = vld [vmem:[%s914 + $0x38] sm:$0xf]
      %v930 = vld [vmem:[%s914 + $0x3c] sm:$0xf]
      %v931 = vld [vmem:[%s914 + $0x40] sm:$0xf]
      %v932 = vld [vmem:[%s914 + $0x44] sm:$0xf]
      %v933 = vld [vmem:[%s914 + $0x48] sm:$0xf]
      %v934 = vld [vmem:[%s914 + $0x4c] sm:$0xf]
      %v935 = vld [vmem:[%s914 + $0x50] sm:$0xf]
      %v936 = vld [vmem:[%s914 + $0x54] sm:$0xf]
      %v937 = vld [vmem:[%s914 + $0x58] sm:$0xf]
      %v938 = vld [vmem:[%s914 + $0x5c] sm:$0xf]
      %v939 = vld [vmem:[%s914 + $0x60] sm:$0xf]
      %v940 = vld [vmem:[%s914 + $0x64] sm:$0xf]
      %v941 = vld [vmem:[%s914 + $0x68] sm:$0xf]
      %v942 = vld [vmem:[%s914 + $0x6c] sm:$0xf]
      %v943 = vld [vmem:[%s914 + $0x70] sm:$0xf]
      %v944 = vld [vmem:[%s914 + $0x74] sm:$0xf]
      %v945 = vld [vmem:[%s914 + $0x78] sm:$0xf]
      %v946 = vld [vmem:[%s914 + $0x7c] sm:$0xf]
      %v947 = vlaneseq
      %v948 = vshrl.u32 %v947, 7
      %v949 = vsub.s32 2, %v948
      %v950 = vrot.slane %v534, %v949
      %v983 = vunpack.c.l.b16 %v915
      %v984 = vunpack.c.l.b16 %v916
      %v985 = vunpack.c.l.b16 %v917
      %v986 = vunpack.c.l.b16 %v918
      %v987 = vunpack.c.l.b16 %v919
      %v988 = vunpack.c.l.b16 %v920
      %v989 = vunpack.c.l.b16 %v921
      %v990 = vunpack.c.l.b16 %v922
      %v991 = vunpack.c.l.b16 %v923
      %v992 = vunpack.c.l.b16 %v924
      %v993 = vunpack.c.l.b16 %v925
      %v994 = vunpack.c.l.b16 %v926
      %v995 = vunpack.c.l.b16 %v927
      %v996 = vunpack.c.l.b16 %v928
      %v997 = vunpack.c.l.b16 %v929
      %v998 = vunpack.c.l.b16 %v930
      %v999 = vunpack.c.l.b16 %v931
      %v1000 = vunpack.c.l.b16 %v932
      %v1001 = vunpack.c.l.b16 %v933
      %v1002 = vunpack.c.l.b16 %v934
      %v1003 = vunpack.c.l.b16 %v935
      %v1004 = vunpack.c.l.b16 %v936
      %v1005 = vunpack.c.l.b16 %v937
      %v1006 = vunpack.c.l.b16 %v938
      %v1007 = vunpack.c.l.b16 %v939
      %v1008 = vunpack.c.l.b16 %v940
      %v1009 = vunpack.c.l.b16 %v941
      %v1010 = vunpack.c.l.b16 %v942
      %v1011 = vunpack.c.l.b16 %v943
      %v1012 = vunpack.c.l.b16 %v944
      %v1013 = vunpack.c.l.b16 %v945
      %v1014 = vunpack.c.l.b16 %v946
      %v1015 = vpack.c.b16 %v984, %v983
      %v1016 = vpack.c.b16 %v986, %v985
      %v1017 = vpack.c.b16 %v988, %v987
      %v1018 = vpack.c.b16 %v990, %v989
      %v1019 = vpack.c.b16 %v992, %v991
      %v1020 = vpack.c.b16 %v994, %v993
      %v1021 = vpack.c.b16 %v996, %v995
      %v1022 = vpack.c.b16 %v998, %v997
      %v1023 = vpack.c.b16 %v1000, %v999
      %v1024 = vpack.c.b16 %v1002, %v1001
      %v1025 = vpack.c.b16 %v1004, %v1003
      %v1026 = vpack.c.b16 %v1006, %v1005
      %v1027 = vpack.c.b16 %v1008, %v1007
      %v1028 = vpack.c.b16 %v1010, %v1009
      %v1029 = vpack.c.b16 %v1012, %v1011
      %v1030 = vpack.c.b16 %v1014, %v1013
      %1047 = vmatprep.subr.bf16.mxu0 0
      %1048 = vmatpush1.bf16.msra.mxu0 %v1015
      %1049 = vmatprep.subr.bf16.mxu0 0
      %1050 = vmatpush1.bf16.msra.mxu0 %v1016
      %1051 = vmatprep.subr.bf16.mxu0 0
      %1052 = vmatpush1.bf16.msra.mxu0 %v1017
      %1053 = vmatprep.subr.bf16.mxu0 0
      %1054 = vmatpush1.bf16.msra.mxu0 %v1018
      %1055 = vmatprep.subr.bf16.mxu0 0
      %1056 = vmatpush1.bf16.msra.mxu0 %v1019
      %1057 = vmatprep.subr.bf16.mxu0 0
      %1058 = vmatpush1.bf16.msra.mxu0 %v1020
      %1059 = vmatprep.subr.bf16.mxu0 0
      %1060 = vmatpush1.bf16.msra.mxu0 %v1021
      %1061 = vmatprep.subr.bf16.mxu0 0
      %1062 = vmatpush1.bf16.msra.mxu0 %v1022
      %1063 = vmatprep.subr.bf16.mxu0 0
      %1064 = vmatpush1.bf16.msra.mxu0 %v1023
      %1065 = vmatprep.subr.bf16.mxu0 0
      %1066 = vmatpush1.bf16.msra.mxu0 %v1024
      %1067 = vmatprep.subr.bf16.mxu0 0
      %1068 = vmatpush1.bf16.msra.mxu0 %v1025
      %1069 = vmatprep.subr.bf16.mxu0 0
      %1070 = vmatpush1.bf16.msra.mxu0 %v1026
      %1071 = vmatprep.subr.bf16.mxu0 0
      %1072 = vmatpush1.bf16.msra.mxu0 %v1027
      %1073 = vmatprep.subr.bf16.mxu0 0
      %1074 = vmatpush1.bf16.msra.mxu0 %v1028
      %1075 = vmatprep.subr.bf16.mxu0 0
      %1076 = vmatpush1.bf16.msra.mxu0 %v1029
      %1077 = vmatprep.subr.bf16.mxu0 0
      %1078 = vmatpush1.bf16.msra.mxu0 %v1030
      %1079 = vmatprep.mubr.bf16.mxu0 %v531
      %1080 = vmatmul.mubr.bf16.gmra.mrb[0].mxu0 %v530
      %v1081 = vpop.f32.mrb[0].mxu0
      %v1082 = vadd.f32 %v950, %v1081
      %v1083 = vpop.f32.mrb[0].mxu0
      %v1084 = vpop.f32.mrb[0].mxu0
      %v1085 = vadd.f32 %v950, %v1084
      %v1086 = vpop.f32.mrb[0].mxu0
      %1087 = vdwg.mxu0
      %v1088 = vsel %vm912, 1, 0
      %v1089 = vsel %vm913, 1, 0
      %1090 = vset.pattern.permute.xlu0 0
      %1091 = vperm.xlu0 %1090, %v1088
      %v1092 = vpop.permute.xlu0 %1091
      %1093 = vset.pattern.permute.xlu0 0
      %1094 = vperm.xlu0 %1093, %v1089
      %v1095 = vpop.permute.xlu0 %1094
      %vm1096 = vcmp.eq.s32.totalorder %v1092, 1
      %vm1097 = vcmp.eq.s32.totalorder %v1095, 1
      %v1098 = vsel %vm1096, %v1082, %v910
      %v1099 = vsel %vm1097, %v1085, %v911
      %vm1100 = vcmp.gt.f32.partialorder %v1098, 0.0
      %vm1101 = vcmp.gt.f32.partialorder %v1099, 0.0
      %v1102 = vmin.f32 %v1098, 0.0
      %v1103 = vmin.f32 %v1099, 0.0
      %v1104 = vmul.f32 %v1102, 1.442695
      %v1105 = vpow.pop %v1104
      %v1106 = vmul.f32 %v1103, 1.442695
      %v1107 = vpow.pop %v1106
      %v1108 = vsub.f32 %v1105, 1.0
      %v1109 = vsub.f32 %v1107, 1.0
      %v1110 = vsel %vm1100, %v1098, %v1108
      %v1111 = vsel %vm1101, %v1099, %v1109
      %v1112 = vpack.c.bf16 %v1111, %v1110
      %v1113 = vld [vmem:[#allocation11] sm:$0xf]
      %v1114 = vld [vmem:[#allocation11 + $0x4] sm:$0xf]
      %v1115 = vld [vmem:[#allocation11 + $0x8] sm:$0xf]
      %v1116 = vld [vmem:[#allocation11 + $0xc] sm:$0xf]
      %v1117 = vld [vmem:[#allocation11 + $0x10] sm:$0xf]
      %v1118 = vld [vmem:[#allocation11 + $0x14] sm:$0xf]
      %v1119 = vld [vmem:[#allocation11 + $0x18] sm:$0xf]
      %v1120 = vld [vmem:[#allocation11 + $0x1c] sm:$0xf]
      %v1121 = vld [vmem:[#allocation11 + $0x20] sm:$0xf]
      %v1122 = vld [vmem:[#allocation11 + $0x24] sm:$0xf]
      %v1123 = vld [vmem:[#allocation11 + $0x28] sm:$0xf]
      %v1124 = vld [vmem:[#allocation11 + $0x2c] sm:$0xf]
      %v1125 = vld [vmem:[#allocation11 + $0x30] sm:$0xf]
      %v1126 = vld [vmem:[#allocation11 + $0x34] sm:$0xf]
      %v1127 = vld [vmem:[#allocation11 + $0x38] sm:$0xf]
      %v1128 = vld [vmem:[#allocation11 + $0x3c] sm:$0xf]
      %v1129 = vlaneseq
      %v1130 = vshrl.u32 %v1129, 7
      %v1131 = vsub.s32 0, %v1130
      %v1132 = vrot.slane %v535, %v1131
      %v1149 = vunpack.c.l.b16 %v1113
      %v1150 = vunpack.c.l.b16 %v1114
      %v1151 = vunpack.c.l.b16 %v1115
      %v1152 = vunpack.c.l.b16 %v1116
      %v1153 = vunpack.c.l.b16 %v1117
      %v1154 = vunpack.c.l.b16 %v1118
      %v1155 = vunpack.c.l.b16 %v1119
      %v1156 = vunpack.c.l.b16 %v1120
      %v1157 = vunpack.c.l.b16 %v1121
      %v1158 = vunpack.c.l.b16 %v1122
      %v1159 = vunpack.c.l.b16 %v1123
      %v1160 = vunpack.c.l.b16 %v1124
      %v1161 = vunpack.c.l.b16 %v1125
      %v1162 = vunpack.c.l.b16 %v1126
      %v1163 = vunpack.c.l.b16 %v1127
      %v1164 = vunpack.c.l.b16 %v1128
      %v1165 = vpack.c.b16 %v1150, %v1149
      %v1166 = vpack.c.b16 %v1152, %v1151
      %v1167 = vpack.c.b16 %v1154, %v1153
      %v1168 = vpack.c.b16 %v1156, %v1155
      %v1169 = vpack.c.b16 %v1158, %v1157
      %v1170 = vpack.c.b16 %v1160, %v1159
      %v1171 = vpack.c.b16 %v1162, %v1161
      %v1172 = vpack.c.b16 %v1164, %v1163
      %1181 = vmatprep.subr.bf16.mxu0 0
      %1182 = vmatpush1.bf16.msra.mxu0 %v1165
      %1183 = vmatprep.subr.bf16.mxu0 0
      %1184 = vmatpush1.bf16.msra.mxu0 %v1166
      %1185 = vmatprep.subr.bf16.mxu0 0
      %1186 = vmatpush1.bf16.msra.mxu0 %v1167
      %1187 = vmatprep.subr.bf16.mxu0 0
      %1188 = vmatpush1.bf16.msra.mxu0 %v1168
      %1189 = vmatprep.subr.bf16.mxu0 0
      %1190 = vmatpush1.bf16.msra.mxu0 %v1169
      %1191 = vmatprep.subr.bf16.mxu0 0
      %1192 = vmatpush1.bf16.msra.mxu0 %v1170
      %1193 = vmatprep.subr.bf16.mxu0 0
      %1194 = vmatpush1.bf16.msra.mxu0 %v1171
      %1195 = vmatprep.subr.bf16.mxu0 0
      %1196 = vmatpush1.bf16.msra.mxu0 %v1172
      %1197 = vmatprep.subr.bf16.mxu0 0
      %1198 = vmatpush1.bf16.msra.mxu0 0
      %1199 = vmatprep.subr.bf16.mxu0 0
      %1200 = vmatpush1.bf16.msra.mxu0 0
      %1201 = vmatprep.subr.bf16.mxu0 0
      %1202 = vmatpush1.bf16.msra.mxu0 0
      %1203 = vmatprep.subr.bf16.mxu0 0
      %1204 = vmatpush1.bf16.msra.mxu0 0
      %1205 = vmatprep.subr.bf16.mxu0 0
      %1206 = vmatpush1.bf16.msra.mxu0 0
      %1207 = vmatprep.subr.bf16.mxu0 0
      %1208 = vmatpush1.bf16.msra.mxu0 0
      %1209 = vmatprep.subr.bf16.mxu0 0
      %1210 = vmatpush1.bf16.msra.mxu0 0
      %1211 = vmatprep.subr.bf16.mxu0 0
      %1212 = vmatpush1.bf16.msra.mxu0 0
      %1213 = vmatprep.mubr.bf16.mxu0 0
      %1214 = vmatmul.mubr.bf16.gmra.mrb[0].mxu0 %v1112
      %v1215 = vpop.f32.mrb[0].mxu0
      %v1216 = vadd.f32 %v1132, %v1215
      %v1217 = vpop.f32.mrb[0].mxu0
      %v1218 = vpop.f32.mrb[0].mxu0
      %v1219 = vadd.f32 %v1132, %v1218
      %v1220 = vpop.f32.mrb[0].mxu0
      %1221 = vdwg.mxu0
      %v1222 = vsel %vm720, %v1216, 0.0
      %v1223 = vsel %vm721, %v1219, 0.0
      %s1224 = scalar_lea.vmem [#allocation11], 64
      %v1225 = vld [vmem:[%s1224] sm:$0xf]
      %v1226 = vld [vmem:[%s1224 + $0x4] sm:$0xf]
      %v1227 = vld [vmem:[%s1224 + $0x8] sm:$0xf]
      %v1228 = vld [vmem:[%s1224 + $0xc] sm:$0xf]
      %v1229 = vld [vmem:[%s1224 + $0x10] sm:$0xf]
      %v1230 = vld [vmem:[%s1224 + $0x14] sm:$0xf]
      %v1231 = vld [vmem:[%s1224 + $0x18] sm:$0xf]
      %v1232 = vld [vmem:[%s1224 + $0x1c] sm:$0xf]
      %v1233 = vld [vmem:[%s1224 + $0x20] sm:$0xf]
      %v1234 = vld [vmem:[%s1224 + $0x24] sm:$0xf]
      %v1235 = vld [vmem:[%s1224 + $0x28] sm:$0xf]
      %v1236 = vld [vmem:[%s1224 + $0x2c] sm:$0xf]
      %v1237 = vld [vmem:[%s1224 + $0x30] sm:$0xf]
      %v1238 = vld [vmem:[%s1224 + $0x34] sm:$0xf]
      %v1239 = vld [vmem:[%s1224 + $0x38] sm:$0xf]
      %v1240 = vld [vmem:[%s1224 + $0x3c] sm:$0xf]
      %v1241 = vlaneseq
      %v1242 = vshrl.u32 %v1241, 7
      %v1243 = vsub.s32 1, %v1242
      %v1244 = vrot.slane %v535, %v1243
      %v1261 = vunpack.c.l.b16 %v1225
      %v1262 = vunpack.c.l.b16 %v1226
      %v1263 = vunpack.c.l.b16 %v1227
      %v1264 = vunpack.c.l.b16 %v1228
      %v1265 = vunpack.c.l.b16 %v1229
      %v1266 = vunpack.c.l.b16 %v1230
      %v1267 = vunpack.c.l.b16 %v1231
      %v1268 = vunpack.c.l.b16 %v1232
      %v1269 = vunpack.c.l.b16 %v1233
      %v1270 = vunpack.c.l.b16 %v1234
      %v1271 = vunpack.c.l.b16 %v1235
      %v1272 = vunpack.c.l.b16 %v1236
      %v1273 = vunpack.c.l.b16 %v1237
      %v1274 = vunpack.c.l.b16 %v1238
      %v1275 = vunpack.c.l.b16 %v1239
      %v1276 = vunpack.c.l.b16 %v1240
      %v1277 = vpack.c.b16 %v1262, %v1261
      %v1278 = vpack.c.b16 %v1264, %v1263
      %v1279 = vpack.c.b16 %v1266, %v1265
      %v1280 = vpack.c.b16 %v1268, %v1267
      %v1281 = vpack.c.b16 %v1270, %v1269
      %v1282 = vpack.c.b16 %v1272, %v1271
      %v1283 = vpack.c.b16 %v1274, %v1273
      %v1284 = vpack.c.b16 %v1276, %v1275
      %1293 = vmatprep.subr.bf16.mxu0 0
      %1294 = vmatpush1.bf16.msra.mxu0 %v1277
      %1295 = vmatprep.subr.bf16.mxu0 0
      %1296 = vmatpush1.bf16.msra.mxu0 %v1278
      %1297 = vmatprep.subr.bf16.mxu0 0
      %1298 = vmatpush1.bf16.msra.mxu0 %v1279
      %1299 = vmatprep.subr.bf16.mxu0 0
      %1300 = vmatpush1.bf16.msra.mxu0 %v1280
      %1301 = vmatprep.subr.bf16.mxu0 0
      %1302 = vmatpush1.bf16.msra.mxu0 %v1281
      %1303 = vmatprep.subr.bf16.mxu0 0
      %1304 = vmatpush1.bf16.msra.mxu0 %v1282
      %1305 = vmatprep.subr.bf16.mxu0 0
      %1306 = vmatpush1.bf16.msra.mxu0 %v1283
      %1307 = vmatprep.subr.bf16.mxu0 0
      %1308 = vmatpush1.bf16.msra.mxu0 %v1284
      %1309 = vmatprep.subr.bf16.mxu0 0
      %1310 = vmatpush1.bf16.msra.mxu0 0
      %1311 = vmatprep.subr.bf16.mxu0 0
      %1312 = vmatpush1.bf16.msra.mxu0 0
      %1313 = vmatprep.subr.bf16.mxu0 0
      %1314 = vmatpush1.bf16.msra.mxu0 0
      %1315 = vmatprep.subr.bf16.mxu0 0
      %1316 = vmatpush1.bf16.msra.mxu0 0
      %1317 = vmatprep.subr.bf16.mxu0 0
      %1318 = vmatpush1.bf16.msra.mxu0 0
      %1319 = vmatprep.subr.bf16.mxu0 0
      %1320 = vmatpush1.bf16.msra.mxu0 0
      %1321 = vmatprep.subr.bf16.mxu0 0
      %1322 = vmatpush1.bf16.msra.mxu0 0
      %1323 = vmatprep.subr.bf16.mxu0 0
      %1324 = vmatpush1.bf16.msra.mxu0 0
      %1325 = vmatprep.mubr.bf16.mxu0 0
      %1326 = vmatmul.mubr.bf16.gmra.mrb[0].mxu0 %v1112
      %v1327 = vpop.f32.mrb[0].mxu0
      %v1328 = vadd.f32 %v1244, %v1327
      %v1329 = vpop.f32.mrb[0].mxu0
      %v1330 = vpop.f32.mrb[0].mxu0
      %v1331 = vadd.f32 %v1244, %v1330
      %v1332 = vpop.f32.mrb[0].mxu0
      %1333 = vdwg.mxu0
      %v1334 = vsel %vm908, %v1328, %v1222
      %v1335 = vsel %vm909, %v1331, %v1223
      %s1336 = scalar_lea.vmem [#allocation11], 128
      %v1337 = vld [vmem:[%s1336] sm:$0xf]
      %v1338 = vld [vmem:[%s1336 + $0x4] sm:$0xf]
      %v1339 = vld [vmem:[%s1336 + $0x8] sm:$0xf]
      %v1340 = vld [vmem:[%s1336 + $0xc] sm:$0xf]
      %v1341 = vld [vmem:[%s1336 + $0x10] sm:$0xf]
      %v1342 = vld [vmem:[%s1336 + $0x14] sm:$0xf]
      %v1343 = vld [vmem:[%s1336 + $0x18] sm:$0xf]
      %v1344 = vld [vmem:[%s1336 + $0x1c] sm:$0xf]
      %v1345 = vld [vmem:[%s1336 + $0x20] sm:$0xf]
      %v1346 = vld [vmem:[%s1336 + $0x24] sm:$0xf]
      %v1347 = vld [vmem:[%s1336 + $0x28] sm:$0xf]
      %v1348 = vld [vmem:[%s1336 + $0x2c] sm:$0xf]
      %v1349 = vld [vmem:[%s1336 + $0x30] sm:$0xf]
      %v1350 = vld [vmem:[%s1336 + $0x34] sm:$0xf]
      %v1351 = vld [vmem:[%s1336 + $0x38] sm:$0xf]
      %v1352 = vld [vmem:[%s1336 + $0x3c] sm:$0xf]
      %v1353 = vlaneseq
      %v1354 = vshrl.u32 %v1353, 7
      %v1355 = vsub.s32 2, %v1354
      %v1356 = vrot.slane %v535, %v1355
      %v1373 = vunpack.c.l.b16 %v1337
      %v1374 = vunpack.c.l.b16 %v1338
      %v1375 = vunpack.c.l.b16 %v1339
      %v1376 = vunpack.c.l.b16 %v1340
      %v1377 = vunpack.c.l.b16 %v1341
      %v1378 = vunpack.c.l.b16 %v1342
      %v1379 = vunpack.c.l.b16 %v1343
      %v1380 = vunpack.c.l.b16 %v1344
      %v1381 = vunpack.c.l.b16 %v1345
      %v1382 = vunpack.c.l.b16 %v1346
      %v1383 = vunpack.c.l.b16 %v1347
      %v1384 = vunpack.c.l.b16 %v1348
      %v1385 = vunpack.c.l.b16 %v1349
      %v1386 = vunpack.c.l.b16 %v1350
      %v1387 = vunpack.c.l.b16 %v1351
      %v1388 = vunpack.c.l.b16 %v1352
      %v1389 = vpack.c.b16 %v1374, %v1373
      %v1390 = vpack.c.b16 %v1376, %v1375
      %v1391 = vpack.c.b16 %v1378, %v1377
      %v1392 = vpack.c.b16 %v1380, %v1379
      %v1393 = vpack.c.b16 %v1382, %v1381
      %v1394 = vpack.c.b16 %v1384, %v1383
      %v1395 = vpack.c.b16 %v1386, %v1385
      %v1396 = vpack.c.b16 %v1388, %v1387
      %1405 = vmatprep.subr.bf16.mxu0 0
      %1406 = vmatpush1.bf16.msra.mxu0 %v1389
      %1407 = vmatprep.subr.bf16.mxu0 0
      %1408 = vmatpush1.bf16.msra.mxu0 %v1390
      %1409 = vmatprep.subr.bf16.mxu0 0
      %1410 = vmatpush1.bf16.msra.mxu0 %v1391
      %1411 = vmatprep.subr.bf16.mxu0 0
      %1412 = vmatpush1.bf16.msra.mxu0 %v1392
      %1413 = vmatprep.subr.bf16.mxu0 0
      %1414 = vmatpush1.bf16.msra.mxu0 %v1393
      %1415 = vmatprep.subr.bf16.mxu0 0
      %1416 = vmatpush1.bf16.msra.mxu0 %v1394
      %1417 = vmatprep.subr.bf16.mxu0 0
      %1418 = vmatpush1.bf16.msra.mxu0 %v1395
      %1419 = vmatprep.subr.bf16.mxu0 0
      %1420 = vmatpush1.bf16.msra.mxu0 %v1396
      %1421 = vmatprep.subr.bf16.mxu0 0
      %1422 = vmatpush1.bf16.msra.mxu0 0
      %1423 = vmatprep.subr.bf16.mxu0 0
      %1424 = vmatpush1.bf16.msra.mxu0 0
      %1425 = vmatprep.subr.bf16.mxu0 0
      %1426 = vmatpush1.bf16.msra.mxu0 0
      %1427 = vmatprep.subr.bf16.mxu0 0
      %1428 = vmatpush1.bf16.msra.mxu0 0
      %1429 = vmatprep.subr.bf16.mxu0 0
      %1430 = vmatpush1.bf16.msra.mxu0 0
      %1431 = vmatprep.subr.bf16.mxu0 0
      %1432 = vmatpush1.bf16.msra.mxu0 0
      %1433 = vmatprep.subr.bf16.mxu0 0
      %1434 = vmatpush1.bf16.msra.mxu0 0
      %1435 = vmatprep.subr.bf16.mxu0 0
      %1436 = vmatpush1.bf16.msra.mxu0 0
      %1437 = vmatprep.mubr.bf16.mxu0 0
      %1438 = vmatmul.mubr.bf16.gmra.mrb[0].mxu0 %v1112
      %v1439 = vpop.f32.mrb[0].mxu0
      %v1440 = vadd.f32 %v1356, %v1439
      %v1441 = vpop.f32.mrb[0].mxu0
      %v1442 = vpop.f32.mrb[0].mxu0
      %v1443 = vadd.f32 %v1356, %v1442
      %v1444 = vpop.f32.mrb[0].mxu0
      %1445 = vdwg.mxu0
      %v1446 = vsel %vm1096, %v1440, %v1334
      %v1447 = vsel %vm1097, %v1443, %v1335
      %vm1448 = vcmp.gt.f32.partialorder %v1446, 0.0
      %vm1449 = vcmp.gt.f32.partialorder %v1447, 0.0
      %v1450 = vmin.f32 %v1446, 0.0
      %v1451 = vmin.f32 %v1447, 0.0
      %v1452 = vmul.f32 %v1450, 1.442695
      %v1453 = vpow.pop %v1452
      %v1454 = vmul.f32 %v1451, 1.442695
      %v1455 = vpow.pop %v1454
      %v1456 = vsub.f32 %v1453, 1.0
      %v1457 = vsub.f32 %v1455, 1.0
      %v1458 = vsel %vm1448, %v1446, %v1456
      %v1459 = vsel %vm1449, %v1447, %v1457
      %v1460 = vpack.c.bf16 %v1459, %v1458
      %v1461 = vld [vmem:[#allocation12] sm:$0xf]
      %v1462 = vld [vmem:[#allocation12 + $0x4] sm:$0xf]
      %v1463 = vld [vmem:[#allocation12 + $0x8] sm:$0xf]
      %v1464 = vld [vmem:[#allocation12 + $0xc] sm:$0xf]
      %v1465 = vld [vmem:[#allocation12 + $0x10] sm:$0xf]
      %v1466 = vld [vmem:[#allocation12 + $0x14] sm:$0xf]
      %v1467 = vld [vmem:[#allocation12 + $0x18] sm:$0xf]
      %v1468 = vld [vmem:[#allocation12 + $0x1c] sm:$0xf]
      %v1469 = vld [vmem:[#allocation12 + $0x20] sm:$0xf]
      %v1470 = vld [vmem:[#allocation12 + $0x24] sm:$0xf]
      %v1471 = vld [vmem:[#allocation12 + $0x28] sm:$0xf]
      %v1472 = vld [vmem:[#allocation12 + $0x2c] sm:$0xf]
      %v1473 = vld [vmem:[#allocation12 + $0x30] sm:$0xf]
      %v1474 = vld [vmem:[#allocation12 + $0x34] sm:$0xf]
      %v1475 = vld [vmem:[#allocation12 + $0x38] sm:$0xf]
      %v1476 = vld [vmem:[#allocation12 + $0x3c] sm:$0xf]
      %v1477 = vlaneseq
      %v1478 = vshrl.u32 %v1477, 7
      %v1479 = vsub.s32 0, %v1478
      %v1480 = vrot.slane %v536, %v1479
      %v1497 = vunpack.c.l.b16 %v1461
      %v1498 = vunpack.c.l.b16 %v1462
      %v1499 = vunpack.c.l.b16 %v1463
      %v1500 = vunpack.c.l.b16 %v1464
      %v1501 = vunpack.c.l.b16 %v1465
      %v1502 = vunpack.c.l.b16 %v1466
      %v1503 = vunpack.c.l.b16 %v1467
      %v1504 = vunpack.c.l.b16 %v1468
      %v1505 = vunpack.c.l.b16 %v1469
      %v1506 = vunpack.c.l.b16 %v1470
      %v1507 = vunpack.c.l.b16 %v1471
      %v1508 = vunpack.c.l.b16 %v1472
      %v1509 = vunpack.c.l.b16 %v1473
      %v1510 = vunpack.c.l.b16 %v1474
      %v1511 = vunpack.c.l.b16 %v1475
      %v1512 = vunpack.c.l.b16 %v1476
      %v1513 = vpack.c.b16 %v1498, %v1497
      %v1514 = vpack.c.b16 %v1500, %v1499
      %v1515 = vpack.c.b16 %v1502, %v1501
      %v1516 = vpack.c.b16 %v1504, %v1503
      %v1517 = vpack.c.b16 %v1506, %v1505
      %v1518 = vpack.c.b16 %v1508, %v1507
      %v1519 = vpack.c.b16 %v1510, %v1509
      %v1520 = vpack.c.b16 %v1512, %v1511
      %1529 = vmatprep.subr.bf16.mxu0 0
      %1530 = vmatpush1.bf16.msra.mxu0 %v1513
      %1531 = vmatprep.subr.bf16.mxu0 0
      %1532 = vmatpush1.bf16.msra.mxu0 %v1514
      %1533 = vmatprep.subr.bf16.mxu0 0
      %1534 = vmatpush1.bf16.msra.mxu0 %v1515
      %1535 = vmatprep.subr.bf16.mxu0 0
      %1536 = vmatpush1.bf16.msra.mxu0 %v1516
      %1537 = vmatprep.subr.bf16.mxu0 0
      %1538 = vmatpush1.bf16.msra.mxu0 %v1517
      %1539 = vmatprep.subr.bf16.mxu0 0
      %1540 = vmatpush1.bf16.msra.mxu0 %v1518
      %1541 = vmatprep.subr.bf16.mxu0 0
      %1542 = vmatpush1.bf16.msra.mxu0 %v1519
      %1543 = vmatprep.subr.bf16.mxu0 0
      %1544 = vmatpush1.bf16.msra.mxu0 %v1520
      %1545 = vmatprep.subr.bf16.mxu0 0
      %1546 = vmatpush1.bf16.msra.mxu0 0
      %1547 = vmatprep.subr.bf16.mxu0 0
      %1548 = vmatpush1.bf16.msra.mxu0 0
      %1549 = vmatprep.subr.bf16.mxu0 0
      %1550 = vmatpush1.bf16.msra.mxu0 0
      %1551 = vmatprep.subr.bf16.mxu0 0
      %1552 = vmatpush1.bf16.msra.mxu0 0
      %1553 = vmatprep.subr.bf16.mxu0 0
      %1554 = vmatpush1.bf16.msra.mxu0 0
      %1555 = vmatprep.subr.bf16.mxu0 0
      %1556 = vmatpush1.bf16.msra.mxu0 0
      %1557 = vmatprep.subr.bf16.mxu0 0
      %1558 = vmatpush1.bf16.msra.mxu0 0
      %1559 = vmatprep.subr.bf16.mxu0 0
      %1560 = vmatpush1.bf16.msra.mxu0 0
      %1561 = vmatprep.mubr.bf16.mxu0 0
      %1562 = vmatmul.mubr.bf16.gmra.mrb[0].mxu0 %v1460
      %v1563 = vpop.f32.mrb[0].mxu0
      %v1564 = vadd.f32 %v1480, %v1563
      %v1565 = vpop.f32.mrb[0].mxu0
      %v1566 = vpop.f32.mrb[0].mxu0
      %v1567 = vadd.f32 %v1480, %v1566
      %v1568 = vpop.f32.mrb[0].mxu0
      %1569 = vdwg.mxu0
      %v1570 = vsel %vm720, %v1564, 0.0
      %v1571 = vsel %vm721, %v1567, 0.0
      %s1572 = scalar_lea.vmem [#allocation12], 64
      %v1573 = vld [vmem:[%s1572] sm:$0xf]
      %v1574 = vld [vmem:[%s1572 + $0x4] sm:$0xf]
      %v1575 = vld [vmem:[%s1572 + $0x8] sm:$0xf]
      %v1576 = vld [vmem:[%s1572 + $0xc] sm:$0xf]
      %v1577 = vld [vmem:[%s1572 + $0x10] sm:$0xf]
      %v1578 = vld [vmem:[%s1572 + $0x14] sm:$0xf]
      %v1579 = vld [vmem:[%s1572 + $0x18] sm:$0xf]
      %v1580 = vld [vmem:[%s1572 + $0x1c] sm:$0xf]
      %v1581 = vld [vmem:[%s1572 + $0x20] sm:$0xf]
      %v1582 = vld [vmem:[%s1572 + $0x24] sm:$0xf]
      %v1583 = vld [vmem:[%s1572 + $0x28] sm:$0xf]
      %v1584 = vld [vmem:[%s1572 + $0x2c] sm:$0xf]
      %v1585 = vld [vmem:[%s1572 + $0x30] sm:$0xf]
      %v1586 = vld [vmem:[%s1572 + $0x34] sm:$0xf]
      %v1587 = vld [vmem:[%s1572 + $0x38] sm:$0xf]
      %v1588 = vld [vmem:[%s1572 + $0x3c] sm:$0xf]
      %v1589 = vlaneseq
      %v1590 = vshrl.u32 %v1589, 7
      %v1591 = vsub.s32 1, %v1590
      %v1592 = vrot.slane %v536, %v1591
      %v1609 = vunpack.c.l.b16 %v1573
      %v1610 = vunpack.c.l.b16 %v1574
      %v1611 = vunpack.c.l.b16 %v1575
      %v1612 = vunpack.c.l.b16 %v1576
      %v1613 = vunpack.c.l.b16 %v1577
      %v1614 = vunpack.c.l.b16 %v1578
      %v1615 = vunpack.c.l.b16 %v1579
      %v1616 = vunpack.c.l.b16 %v1580
      %v1617 = vunpack.c.l.b16 %v1581
      %v1618 = vunpack.c.l.b16 %v1582
      %v1619 = vunpack.c.l.b16 %v1583
      %v1620 = vunpack.c.l.b16 %v1584
      %v1621 = vunpack.c.l.b16 %v1585
      %v1622 = vunpack.c.l.b16 %v1586
      %v1623 = vunpack.c.l.b16 %v1587
      %v1624 = vunpack.c.l.b16 %v1588
      %v1625 = vpack.c.b16 %v1610, %v1609
      %v1626 = vpack.c.b16 %v1612, %v1611
      %v1627 = vpack.c.b16 %v1614, %v1613
      %v1628 = vpack.c.b16 %v1616, %v1615
      %v1629 = vpack.c.b16 %v1618, %v1617
      %v1630 = vpack.c.b16 %v1620, %v1619
      %v1631 = vpack.c.b16 %v1622, %v1621
      %v1632 = vpack.c.b16 %v1624, %v1623
      %1641 = vmatprep.subr.bf16.mxu0 0
      %1642 = vmatpush1.bf16.msra.mxu0 %v1625
      %1643 = vmatprep.subr.bf16.mxu0 0
      %1644 = vmatpush1.bf16.msra.mxu0 %v1626
      %1645 = vmatprep.subr.bf16.mxu0 0
      %1646 = vmatpush1.bf16.msra.mxu0 %v1627
      %1647 = vmatprep.subr.bf16.mxu0 0
      %1648 = vmatpush1.bf16.msra.mxu0 %v1628
      %1649 = vmatprep.subr.bf16.mxu0 0
      %1650 = vmatpush1.bf16.msra.mxu0 %v1629
      %1651 = vmatprep.subr.bf16.mxu0 0
      %1652 = vmatpush1.bf16.msra.mxu0 %v1630
      %1653 = vmatprep.subr.bf16.mxu0 0
      %1654 = vmatpush1.bf16.msra.mxu0 %v1631
      %1655 = vmatprep.subr.bf16.mxu0 0
      %1656 = vmatpush1.bf16.msra.mxu0 %v1632
      %1657 = vmatprep.subr.bf16.mxu0 0
      %1658 = vmatpush1.bf16.msra.mxu0 0
      %1659 = vmatprep.subr.bf16.mxu0 0
      %1660 = vmatpush1.bf16.msra.mxu0 0
      %1661 = vmatprep.subr.bf16.mxu0 0
      %1662 = vmatpush1.bf16.msra.mxu0 0
      %1663 = vmatprep.subr.bf16.mxu0 0
      %1664 = vmatpush1.bf16.msra.mxu0 0
      %1665 = vmatprep.subr.bf16.mxu0 0
      %1666 = vmatpush1.bf16.msra.mxu0 0
      %1667 = vmatprep.subr.bf16.mxu0 0
      %1668 = vmatpush1.bf16.msra.mxu0 0
      %1669 = vmatprep.subr.bf16.mxu0 0
      %1670 = vmatpush1.bf16.msra.mxu0 0
      %1671 = vmatprep.subr.bf16.mxu0 0
      %1672 = vmatpush1.bf16.msra.mxu0 0
      %1673 = vmatprep.mubr.bf16.mxu0 0
      %1674 = vmatmul.mubr.bf16.gmra.mrb[0].mxu0 %v1460
      %v1675 = vpop.f32.mrb[0].mxu0
      %v1676 = vadd.f32 %v1592, %v1675
      %v1677 = vpop.f32.mrb[0].mxu0
      %v1678 = vpop.f32.mrb[0].mxu0
      %v1679 = vadd.f32 %v1592, %v1678
      %v1680 = vpop.f32.mrb[0].mxu0
      %1681 = vdwg.mxu0
      %v1682 = vsel %vm908, %v1676, %v1570
      %v1683 = vsel %vm909, %v1679, %v1571
      %s1684 = scalar_lea.vmem [#allocation12], 128
      %v1685 = vld [vmem:[%s1684] sm:$0xf]
      %v1686 = vld [vmem:[%s1684 + $0x4] sm:$0xf]
      %v1687 = vld [vmem:[%s1684 + $0x8] sm:$0xf]
      %v1688 = vld [vmem:[%s1684 + $0xc] sm:$0xf]
      %v1689 = vld [vmem:[%s1684 + $0x10] sm:$0xf]
      %v1690 = vld [vmem:[%s1684 + $0x14] sm:$0xf]
      %v1691 = vld [vmem:[%s1684 + $0x18] sm:$0xf]
      %v1692 = vld [vmem:[%s1684 + $0x1c] sm:$0xf]
      %v1693 = vld [vmem:[%s1684 + $0x20] sm:$0xf]
      %v1694 = vld [vmem:[%s1684 + $0x24] sm:$0xf]
      %v1695 = vld [vmem:[%s1684 + $0x28] sm:$0xf]
      %v1696 = vld [vmem:[%s1684 + $0x2c] sm:$0xf]
      %v1697 = vld [vmem:[%s1684 + $0x30] sm:$0xf]
      %v1698 = vld [vmem:[%s1684 + $0x34] sm:$0xf]
      %v1699 = vld [vmem:[%s1684 + $0x38] sm:$0xf]
      %v1700 = vld [vmem:[%s1684 + $0x3c] sm:$0xf]
      %v1701 = vlaneseq
      %v1702 = vshrl.u32 %v1701, 7
      %v1703 = vsub.s32 2, %v1702
      %v1704 = vrot.slane %v536, %v1703
      %v1721 = vunpack.c.l.b16 %v1685
      %v1722 = vunpack.c.l.b16 %v1686
      %v1723 = vunpack.c.l.b16 %v1687
      %v1724 = vunpack.c.l.b16 %v1688
      %v1725 = vunpack.c.l.b16 %v1689
      %v1726 = vunpack.c.l.b16 %v1690
      %v1727 = vunpack.c.l.b16 %v1691
      %v1728 = vunpack.c.l.b16 %v1692
      %v1729 = vunpack.c.l.b16 %v1693
      %v1730 = vunpack.c.l.b16 %v1694
      %v1731 = vunpack.c.l.b16 %v1695
      %v1732 = vunpack.c.l.b16 %v1696
      %v1733 = vunpack.c.l.b16 %v1697
      %v1734 = vunpack.c.l.b16 %v1698
      %v1735 = vunpack.c.l.b16 %v1699
      %v1736 = vunpack.c.l.b16 %v1700
      %v1737 = vpack.c.b16 %v1722, %v1721
      %v1738 = vpack.c.b16 %v1724, %v1723
      %v1739 = vpack.c.b16 %v1726, %v1725
      %v1740 = vpack.c.b16 %v1728, %v1727
      %v1741 = vpack.c.b16 %v1730, %v1729
      %v1742 = vpack.c.b16 %v1732, %v1731
      %v1743 = vpack.c.b16 %v1734, %v1733
      %v1744 = vpack.c.b16 %v1736, %v1735
      %1753 = vmatprep.subr.bf16.mxu0 0
      %1754 = vmatpush1.bf16.msra.mxu0 %v1737
      %1755 = vmatprep.subr.bf16.mxu0 0
      %1756 = vmatpush1.bf16.msra.mxu0 %v1738
      %1757 = vmatprep.subr.bf16.mxu0 0
      %1758 = vmatpush1.bf16.msra.mxu0 %v1739
      %1759 = vmatprep.subr.bf16.mxu0 0
      %1760 = vmatpush1.bf16.msra.mxu0 %v1740
      %1761 = vmatprep.subr.bf16.mxu0 0
      %1762 = vmatpush1.bf16.msra.mxu0 %v1741
      %1763 = vmatprep.subr.bf16.mxu0 0
      %1764 = vmatpush1.bf16.msra.mxu0 %v1742
      %1765 = vmatprep.subr.bf16.mxu0 0
      %1766 = vmatpush1.bf16.msra.mxu0 %v1743
      %1767 = vmatprep.subr.bf16.mxu0 0
      %1768 = vmatpush1.bf16.msra.mxu0 %v1744
      %1769 = vmatprep.subr.bf16.mxu0 0
      %1770 = vmatpush1.bf16.msra.mxu0 0
      %1771 = vmatprep.subr.bf16.mxu0 0
      %1772 = vmatpush1.bf16.msra.mxu0 0
      %1773 = vmatprep.subr.bf16.mxu0 0
      %1774 = vmatpush1.bf16.msra.mxu0 0
      %1775 = vmatprep.subr.bf16.mxu0 0
      %1776 = vmatpush1.bf16.msra.mxu0 0
      %1777 = vmatprep.subr.bf16.mxu0 0
      %1778 = vmatpush1.bf16.msra.mxu0 0
      %1779 = vmatprep.subr.bf16.mxu0 0
      %1780 = vmatpush1.bf16.msra.mxu0 0
      %1781 = vmatprep.subr.bf16.mxu0 0
      %1782 = vmatpush1.bf16.msra.mxu0 0
      %1783 = vmatprep.subr.bf16.mxu0 0
      %1784 = vmatpush1.bf16.msra.mxu0 0
      %1785 = vmatprep.mubr.bf16.mxu0 0
      %1786 = vmatmul.mubr.bf16.gmra.mrb[0].mxu0 %v1460
      %v1787 = vpop.f32.mrb[0].mxu0
      %v1788 = vadd.f32 %v1704, %v1787
      %v1789 = vpop.f32.mrb[0].mxu0
      %v1790 = vpop.f32.mrb[0].mxu0
      %v1791 = vadd.f32 %v1704, %v1790
      %v1792 = vpop.f32.mrb[0].mxu0
      %1793 = vdwg.mxu0
      %v1794 = vsel %vm1096, %v1788, %v1682
      %v1795 = vsel %vm1097, %v1791, %v1683
      %1796 = vst [vmem:[#allocation14] sm:$0xff] %v1794
      %1797 = vst [vmem:[#allocation14 + $0x8] sm:$0xff] %v1795
    $region81: #{tpu_custom_call.1} parent=1 // pred_fallthru
      _
    // Predicated region
    $region82: #{tpu_custom_call.1} parent=1 // pred_check
      _
    $region83: #{tpu_custom_call.1} parent=1 // pred_check_branch
      %1799 = sbr.rel (0) target = $region85
    $region84: #{tpu_custom_call.1} parent=1 // pred_region
      %s1801 = ssub.s32 256, 256
      %1802 = vsyncadd [#allocation5], %s1801
      %s1803 = sshll.u32 [#allocation14], 4
      %s1804 = int_to_ptr.vmem [resolvable:$true] %s1803
      %1809 = dma.vmem_to_hbm [thread:$0]  %s1804, 256, %s12, [#allocation5], 128, 128, 8
    $region85: #{tpu_custom_call.1} parent=1 // pred_fallthru
      _
    // Predicated region
    $region86: #{tpu_custom_call.1} parent=1 // pred_check
      _
    $region87: #{tpu_custom_call.1} parent=1 // pred_check_branch
      %1811 = sbr.rel (0) target = $region89
    $region88: #{tpu_custom_call.1} parent=1 // pred_region
      %1812 = dma.done [#allocation5], 256
    $region89: #{tpu_custom_call.1} parent=1 // pred_fallthru
      _
    %1813 = vsyncpa [#allocation4], 1
    %1814 = vsyncpa [#allocation7], 1
    %1815 = vsyncpa [#allocation10], 1
    %1816 = vsyncpa [#allocation13], 1
    %1817 = vsyncpa [#allocation5], 1

</llo_original>
